<compile_context>
chip_gen: v7x
topology: tpu7x:2x2x1
jax: 0.10.0
libtpu: 0.0.40
codegen_flags: <defaults>
</compile_context>

<pallas_src>
import functools

import jax
import jax.numpy as jnp
from jax.experimental import pallas as pl
from jax.experimental.pallas import tpu as pltpu


# ----------------------------- fused kernel --------------------------------
def _gat3_kernel(x_ref, adj_ref,
                 w1_ref, a1_ref, b1_ref,
                 w2_ref, a2_ref, b2_ref,
                 w3_ref, a3_ref, b3_ref,
                 out_ref, *, n_classes):
    # Additive edge mask built once per forward (single bf16->f32 upcast of adj):
    # 0 on edges, -1e30 on non-edges.  Per layer it costs one add per element.
    neg_mask = (adj_ref[...].astype(jnp.float32) - 1.0) * 1e30        # (N, N)

    def gat_layer(xb, w_ref, a_ref, b_ref, att_from_input):
        # Linear transform on MXU: h = x @ W  (bf16 in, f32 accumulate).
        h = jnp.dot(xb, w_ref[...], preferred_element_type=jnp.float32)   # (N, Fout)
        hb = h.astype(jnp.bfloat16)

        # Attention logits via MXU against packed [att_src.T | att_dst.T].
        # Layer 1: att matrix was pre-folded with W1, so project from x directly.
        att_in = xb if att_from_input else hb
        a = jnp.dot(att_in, a_ref[...], preferred_element_type=jnp.float32)  # (N, 2)
        a_src = a[:, 0:1]                                                    # (N, 1)
        a_dst = a[:, 1:2]                                                    # (N, 1)

        # e[i, j] = LeakyReLU(a_dst[i] + a_src[j], 0.2)   (i = dst, j = src)
        e = a_dst + jnp.transpose(a_src)                                     # (N, N)
        e = jnp.maximum(e, 0.2 * e)              # == LeakyReLU for slope in (0,1)
        e = e + neg_mask                          # non-edges -> ~-1e30

        # Masked softmax over sources (axis=1): max is taken over edges only
        # (self loops keep every row non-empty), so e - m <= 0 and the
        # off-edge entries underflow exactly to 0.
        m = jnp.max(e, axis=1, keepdims=True)
        p = jnp.exp(e - m)                                                   # (N, N)

        # Aggregate first, normalize after (row scale commutes with the matmul).
        num = jnp.dot(p.astype(jnp.bfloat16), hb,
                      preferred_element_type=jnp.float32)                    # (N, Fout)
        inv = pl.reciprocal(jnp.sum(p, axis=1, keepdims=True), approx=True)
        return num * inv + b_ref[...]

    h1 = jnp.maximum(
        gat_layer(x_ref[...].astype(jnp.bfloat16), w1_ref, a1_ref, b1_ref, True), 0.0)
    h2 = jnp.maximum(
        gat_layer(h1.astype(jnp.bfloat16), w2_ref, a2_ref, b2_ref, False), 0.0)
    logits = gat_layer(h2.astype(jnp.bfloat16), w3_ref, a3_ref, b3_ref, False)  # (N, Cpad)

    # Class softmax over the first n_classes lanes only.  Padded lanes are
    # masked to -inf BEFORE the exp (exp(-inf) == 0, no inf*0), and the
    # normalization uses an exact reciprocal so rows sum to 1.
    c_pad = logits.shape[1]
    valid = jax.lax.broadcasted_iota(jnp.int32, (1, c_pad), 1) < n_classes
    lm = jnp.where(valid, logits, -jnp.inf)
    mm = jnp.max(lm, axis=1, keepdims=True)
    ee = jnp.exp(lm - mm)
    probs = ee / jnp.sum(ee, axis=1, keepdims=True)
    out_ref[...] = probs.astype(out_ref.dtype)


# ------------------------------- wrapper ------------------------------------
def _pad_cols(a, cols):
    pad = cols - a.shape[1]
    return jnp.pad(a, ((0, 0), (0, pad))) if pad > 0 else a


def _vmem_limit_bytes(n, in_feat, c_pad):
    # Rough all-resident working set: adj(bf16) + neg_mask/e/p (f32, ~3 live)
    # + p_bf16 + h1/h2/logits + weights, with generous slack.
    est = 24 * n * n + 8 * n * (512 + 256 + c_pad + in_feat) + (8 << 20)
    try:  # cap to the chip's physical VMEM minus headroom (64 MiB on v7x)
        cap = int(pltpu.get_tpu_info().vmem_capacity_bytes) - (8 << 20)
    except Exception:
        cap = 100 << 20
    return int(min(max(est, 32 << 20), cap))


def gat_formal_forward(x, adj, params):
    n, in_feat = x.shape
    n_classes = params["g3"][0].shape[1]
    c_pad = ((n_classes + 127) // 128) * 128             # lane-dense final output

    def pack_att(a_s, a_d):
        return jnp.concatenate([a_s.T, a_d.T], axis=1)   # (Fout, 2)

    # layer 1: fold the attention projection into the feature matmul
    w1, a1s, a1d, b1 = params["g1"]
    att1 = w1 @ pack_att(a1s, a1d)                       # (in_feat, 2)
    # layer 2
    w2, a2s, a2d, b2 = params["g2"]
    att2 = pack_att(a2s, a2d)                            # (512, 2)
    # layer 3 (class dim padded to a lane-dense width)
    w3, a3s, a3d, b3 = params["g3"]
    w3, a3s, a3d, b3 = (_pad_cols(t, c_pad) for t in (w3, a3s, a3d, b3))
    att3 = pack_att(a3s, a3d)                            # (c_pad, 2)

    bf = lambda t: t.astype(jnp.bfloat16)                # matmul operands -> bf16

    vmem = pl.BlockSpec(memory_space=pltpu.MemorySpace.VMEM)
    kernel = functools.partial(_gat3_kernel, n_classes=n_classes)
    out = pl.pallas_call(
        kernel,
        out_shape=jax.ShapeDtypeStruct((n, c_pad), jnp.float32),
        in_specs=[vmem] * 11,
        out_specs=vmem,
        compiler_params=pltpu.CompilerParams(
            vmem_limit_bytes=_vmem_limit_bytes(n, in_feat, c_pad)),
    )(x, adj.astype(jnp.bfloat16),
      bf(w1), bf(att1), b1,
      bf(w2), bf(att2), b2,
      bf(w3), bf(att3), b3)
    return out[:, :n_classes]


# ---------------- pure-JAX reference (same math, f32, no Pallas) ------------
def _ref_layer(x, w, a_s, a_d, b, adj, activation):
    h = x @ w
    asrc = jnp.sum(h * a_s, axis=1, keepdims=True)
    adst = jnp.sum(h * a_d, axis=1, keepdims=True)
    e = adst + asrc.T
    e = jnp.where(e >= 0.0, e, 0.2 * e)
    e = jnp.where(adj > 0.0, e, -1e30)
    alpha = jax.nn.softmax(e, axis=1)
    out = alpha @ h + b
    if activation == "relu":
        return jnp.maximum(out, 0.0)
    return jax.nn.softmax(out, axis=1)


def _ref_forward(x, adj, params):
    x = _ref_layer(x, *params["g1"], adj, "relu")
    x = _ref_layer(x, *params["g2"], adj, "relu")
    return _ref_layer(x, *params["g3"], adj, "softmax")


# -------------------------- parameter construction --------------------------
def _glorot(key, shape):
    fan_in, fan_out = shape[0], shape[1]
    limit = (6.0 / (fan_in + fan_out)) ** 0.5
    return jax.random.uniform(key, shape, jnp.float32, -limit, limit)


def make_params(key, in_feat, n_classes):
    dims = [(in_feat, 512), (512, 256), (256, n_classes)]
    params = {}
    for idx, (fi, fo) in enumerate(dims):
        key, k_w, k_s, k_d = jax.random.split(key, 4)
        params[f"g{idx + 1}"] = (
            _glorot(k_w, (fi, fo)),                 # lin weight  (in, out)
            _glorot(k_s, (1, fo)),                  # att_src     (1, out)
            _glorot(k_d, (1, fo)),                  # att_dst     (1, out)
            jnp.zeros((1, fo), jnp.float32),        # bias
        )
    return params


def edge_index_to_adj(edge_idx, n):
    src, dst = edge_idx[0], edge_idx[1]
    adj = jnp.zeros((n, n), jnp.float32).at[dst, src].set(1.0)
    adj = jnp.maximum(adj, jnp.eye(n, dtype=jnp.float32))   # add self loops
    return adj


if __name__ == "__main__":
    N, IN_FEAT, N_CLASSES = 16, 32, 8

    root = jax.random.PRNGKey(0)
    k_x, k_e, k_p = jax.random.split(root, 3)

    x = jax.random.normal(k_x, (N, IN_FEAT), jnp.float32)

    # deterministic graph: bidirectional ring + 16 random extra edges
    fwd_src = jnp.arange(N, dtype=jnp.int32)
    fwd_dst = (fwd_src + 1) % N
    rnd_src = jax.random.randint(k_e, (16,), 0, N, jnp.int32)
    rnd_dst = jax.random.randint(jax.random.fold_in(k_e, 1), (16,), 0, N, jnp.int32)
    edge_idx = jnp.stack([
        jnp.concatenate([fwd_src, fwd_dst, rnd_src]),
        jnp.concatenate([fwd_dst, fwd_src, rnd_dst]),
    ])                                                     # (2, 48)

    adj = edge_index_to_adj(edge_idx, N)
    params = make_params(k_p, IN_FEAT, N_CLASSES)

    out = jax.block_until_ready(gat_formal_forward(x, adj, params))
    ref = _ref_forward(x, adj, params)

    assert out.shape == (N, N_CLASSES)
    # exact reciprocal on the class softmax -> rows sum to 1 tightly
    assert jnp.allclose(jnp.sum(out, axis=1), 1.0, atol=1e-5)
    # bf16 matmuls + approx reciprocal on attention softmax -> loose vs f32 ref
    assert jnp.allclose(out, ref, atol=2e-2, rtol=2e-2)
    print("KERNEL_OK")
</pallas_src>

<mosaic_0001>
module attributes {stable_mosaic.version = 11 : i64} {
  func.func @_gat3_kernel(%arg0: memref<16x32xf32, #tpu.memory_space<vmem>>, %arg1: memref<16x16xbf16, #tpu.memory_space<vmem>>, %arg2: memref<32x512xbf16, #tpu.memory_space<vmem>>, %arg3: memref<32x2xbf16, #tpu.memory_space<vmem>>, %arg4: memref<1x512xf32, #tpu.memory_space<vmem>>, %arg5: memref<512x256xbf16, #tpu.memory_space<vmem>>, %arg6: memref<256x2xbf16, #tpu.memory_space<vmem>>, %arg7: memref<1x256xf32, #tpu.memory_space<vmem>>, %arg8: memref<256x128xbf16, #tpu.memory_space<vmem>>, %arg9: memref<128x2xbf16, #tpu.memory_space<vmem>>, %arg10: memref<1x128xf32, #tpu.memory_space<vmem>>, %arg11: memref<16x128xf32, #tpu.memory_space<vmem>>) attributes {dimension_semantics = [], scalar_prefetch = 0 : i64, scratch_operands = 0 : i64, tpu.core_type = #tpu.core_type<tc>} {
    %c0 = arith.constant 0 : index
    %c0_0 = arith.constant 0 : index
    %0 = vector.load %arg1[%c0, %c0_0] : memref<16x16xbf16, #tpu.memory_space<vmem>>, vector<16x16xbf16>
    %1 = arith.extf %0 : vector<16x16xbf16> to vector<16x16xf32>
    %cst = arith.constant 1.000000e+00 : f32
    %2 = vector.broadcast %cst : f32 to vector<16x16xf32>
    %3 = arith.subf %1, %2 : vector<16x16xf32>
    %cst_1 = arith.constant 1.000000e+30 : f32
    %4 = vector.broadcast %cst_1 : f32 to vector<16x16xf32>
    %5 = arith.mulf %3, %4 : vector<16x16xf32>
    %c0_2 = arith.constant 0 : index
    %c0_3 = arith.constant 0 : index
    %6 = vector.load %arg0[%c0_2, %c0_3] : memref<16x32xf32, #tpu.memory_space<vmem>>, vector<16x32xf32>
    %7 = arith.truncf %6 : vector<16x32xf32> to vector<16x32xbf16>
    %c0_4 = arith.constant 0 : index
    %c0_5 = arith.constant 0 : index
    %8 = vector.load %arg2[%c0_4, %c0_5] : memref<32x512xbf16, #tpu.memory_space<vmem>>, vector<32x512xbf16>
    %cst_6 = arith.constant dense<0.000000e+00> : vector<16x512xf32>
    %9 = tpu.matmul %7, %8, %cst_6 {dimension_numbers = #tpu.dot_dimension_numbers<[1], [0], [0], [1], [0, 0, 1, 1], [], []>} : vector<16x32xbf16>, vector<32x512xbf16>, vector<16x512xf32> -> vector<16x512xf32>
    %10 = arith.truncf %9 : vector<16x512xf32> to vector<16x512xbf16>
    %c0_7 = arith.constant 0 : index
    %c0_8 = arith.constant 0 : index
    %11 = vector.load %arg3[%c0_7, %c0_8] : memref<32x2xbf16, #tpu.memory_space<vmem>>, vector<32x2xbf16>
    %cst_9 = arith.constant dense<0.000000e+00> : vector<16x2xf32>
    %12 = tpu.matmul %7, %11, %cst_9 {dimension_numbers = #tpu.dot_dimension_numbers<[1], [0], [0], [1], [0, 0, 1, 1], [], []>} : vector<16x32xbf16>, vector<32x2xbf16>, vector<16x2xf32> -> vector<16x2xf32>
    %13 = vector.extract_strided_slice %12 {offsets = [0, 0], sizes = [16, 1], strides = [1, 1]} : vector<16x2xf32> to vector<16x1xf32>
    %14 = vector.extract_strided_slice %12 {offsets = [0, 1], sizes = [16, 1], strides = [1, 1]} : vector<16x2xf32> to vector<16x1xf32>
    %15 = tpu.transpose %13, [1, 0] : vector<16x1xf32> -> vector<1x16xf32>
    %16 = vector.broadcast %14 : vector<16x1xf32> to vector<16x16xf32>
    %17 = vector.broadcast %15 : vector<1x16xf32> to vector<16x16xf32>
    %18 = arith.addf %16, %17 : vector<16x16xf32>
    %cst_10 = arith.constant 2.000000e-01 : f32
    %19 = vector.broadcast %cst_10 : f32 to vector<16x16xf32>
    %20 = arith.mulf %19, %18 : vector<16x16xf32>
    %21 = arith.maximumf %18, %20 : vector<16x16xf32>
    %22 = arith.addf %21, %5 : vector<16x16xf32>
    %cst_11 = arith.constant dense<0xFF800000> : vector<16xf32>
    %23 = vector.multi_reduction <maximumf>, %22, %cst_11 [1] : vector<16x16xf32> to vector<16xf32>
    %24 = vector.shape_cast %23 : vector<16xf32> to vector<16x1xf32>
    %25 = vector.broadcast %24 : vector<16x1xf32> to vector<16x16xf32>
    %26 = arith.subf %22, %25 : vector<16x16xf32>
    %27 = math.exp %26 : vector<16x16xf32>
    %28 = arith.truncf %27 : vector<16x16xf32> to vector<16x16xbf16>
    %cst_12 = arith.constant dense<0.000000e+00> : vector<16x512xf32>
    %29 = tpu.matmul %28, %10, %cst_12 {dimension_numbers = #tpu.dot_dimension_numbers<[1], [0], [0], [1], [0, 0, 1, 1], [], []>} : vector<16x16xbf16>, vector<16x512xbf16>, vector<16x512xf32> -> vector<16x512xf32>
    %cst_13 = arith.constant dense<0.000000e+00> : vector<16xf32>
    %30 = vector.multi_reduction <add>, %27, %cst_13 [1] : vector<16x16xf32> to vector<16xf32>
    %31 = vector.shape_cast %30 : vector<16xf32> to vector<16x1xf32>
    %32 = tpu.reciprocal %31 {approx = true} : vector<16x1xf32> -> vector<16x1xf32>
    %33 = vector.broadcast %32 : vector<16x1xf32> to vector<16x512xf32>
    %34 = arith.mulf %29, %33 : vector<16x512xf32>
    %c0_14 = arith.constant 0 : index
    %c0_15 = arith.constant 0 : index
    %35 = vector.load %arg4[%c0_14, %c0_15] : memref<1x512xf32, #tpu.memory_space<vmem>>, vector<1x512xf32>
    %36 = vector.broadcast %35 : vector<1x512xf32> to vector<16x512xf32>
    %37 = arith.addf %34, %36 : vector<16x512xf32>
    %cst_16 = arith.constant 0.000000e+00 : f32
    %38 = vector.broadcast %cst_16 : f32 to vector<16x512xf32>
    %39 = arith.maximumf %37, %38 : vector<16x512xf32>
    %40 = arith.truncf %39 : vector<16x512xf32> to vector<16x512xbf16>
    %c0_17 = arith.constant 0 : index
    %c0_18 = arith.constant 0 : index
    %41 = vector.load %arg5[%c0_17, %c0_18] : memref<512x256xbf16, #tpu.memory_space<vmem>>, vector<512x256xbf16>
    %cst_19 = arith.constant dense<0.000000e+00> : vector<16x256xf32>
    %42 = tpu.matmul %40, %41, %cst_19 {dimension_numbers = #tpu.dot_dimension_numbers<[1], [0], [0], [1], [0, 0, 1, 1], [], []>} : vector<16x512xbf16>, vector<512x256xbf16>, vector<16x256xf32> -> vector<16x256xf32>
    %43 = arith.truncf %42 : vector<16x256xf32> to vector<16x256xbf16>
    %c0_20 = arith.constant 0 : index
    %c0_21 = arith.constant 0 : index
    %44 = vector.load %arg6[%c0_20, %c0_21] : memref<256x2xbf16, #tpu.memory_space<vmem>>, vector<256x2xbf16>
    %cst_22 = arith.constant dense<0.000000e+00> : vector<16x2xf32>
    %45 = tpu.matmul %43, %44, %cst_22 {dimension_numbers = #tpu.dot_dimension_numbers<[1], [0], [0], [1], [0, 0, 1, 1], [], []>} : vector<16x256xbf16>, vector<256x2xbf16>, vector<16x2xf32> -> vector<16x2xf32>
    %46 = vector.extract_strided_slice %45 {offsets = [0, 0], sizes = [16, 1], strides = [1, 1]} : vector<16x2xf32> to vector<16x1xf32>
    %47 = vector.extract_strided_slice %45 {offsets = [0, 1], sizes = [16, 1], strides = [1, 1]} : vector<16x2xf32> to vector<16x1xf32>
    %48 = tpu.transpose %46, [1, 0] : vector<16x1xf32> -> vector<1x16xf32>
    %49 = vector.broadcast %47 : vector<16x1xf32> to vector<16x16xf32>
    %50 = vector.broadcast %48 : vector<1x16xf32> to vector<16x16xf32>
    %51 = arith.addf %49, %50 : vector<16x16xf32>
    %cst_23 = arith.constant 2.000000e-01 : f32
    %52 = vector.broadcast %cst_23 : f32 to vector<16x16xf32>
    %53 = arith.mulf %52, %51 : vector<16x16xf32>
    %54 = arith.maximumf %51, %53 : vector<16x16xf32>
    %55 = arith.addf %54, %5 : vector<16x16xf32>
    %cst_24 = arith.constant dense<0xFF800000> : vector<16xf32>
    %56 = vector.multi_reduction <maximumf>, %55, %cst_24 [1] : vector<16x16xf32> to vector<16xf32>
    %57 = vector.shape_cast %56 : vector<16xf32> to vector<16x1xf32>
    %58 = vector.broadcast %57 : vector<16x1xf32> to vector<16x16xf32>
    %59 = arith.subf %55, %58 : vector<16x16xf32>
    %60 = math.exp %59 : vector<16x16xf32>
    %61 = arith.truncf %60 : vector<16x16xf32> to vector<16x16xbf16>
    %cst_25 = arith.constant dense<0.000000e+00> : vector<16x256xf32>
    %62 = tpu.matmul %61, %43, %cst_25 {dimension_numbers = #tpu.dot_dimension_numbers<[1], [0], [0], [1], [0, 0, 1, 1], [], []>} : vector<16x16xbf16>, vector<16x256xbf16>, vector<16x256xf32> -> vector<16x256xf32>
    %cst_26 = arith.constant dense<0.000000e+00> : vector<16xf32>
    %63 = vector.multi_reduction <add>, %60, %cst_26 [1] : vector<16x16xf32> to vector<16xf32>
    %64 = vector.shape_cast %63 : vector<16xf32> to vector<16x1xf32>
    %65 = tpu.reciprocal %64 {approx = true} : vector<16x1xf32> -> vector<16x1xf32>
    %66 = vector.broadcast %65 : vector<16x1xf32> to vector<16x256xf32>
    %67 = arith.mulf %62, %66 : vector<16x256xf32>
    %c0_27 = arith.constant 0 : index
    %c0_28 = arith.constant 0 : index
    %68 = vector.load %arg7[%c0_27, %c0_28] : memref<1x256xf32, #tpu.memory_space<vmem>>, vector<1x256xf32>
    %69 = vector.broadcast %68 : vector<1x256xf32> to vector<16x256xf32>
    %70 = arith.addf %67, %69 : vector<16x256xf32>
    %cst_29 = arith.constant 0.000000e+00 : f32
    %71 = vector.broadcast %cst_29 : f32 to vector<16x256xf32>
    %72 = arith.maximumf %70, %71 : vector<16x256xf32>
    %73 = arith.truncf %72 : vector<16x256xf32> to vector<16x256xbf16>
    %c0_30 = arith.constant 0 : index
    %c0_31 = arith.constant 0 : index
    %74 = vector.load %arg8[%c0_30, %c0_31] : memref<256x128xbf16, #tpu.memory_space<vmem>>, vector<256x128xbf16>
    %cst_32 = arith.constant dense<0.000000e+00> : vector<16x128xf32>
    %75 = tpu.matmul %73, %74, %cst_32 {dimension_numbers = #tpu.dot_dimension_numbers<[1], [0], [0], [1], [0, 0, 1, 1], [], []>} : vector<16x256xbf16>, vector<256x128xbf16>, vector<16x128xf32> -> vector<16x128xf32>
    %76 = arith.truncf %75 : vector<16x128xf32> to vector<16x128xbf16>
    %c0_33 = arith.constant 0 : index
    %c0_34 = arith.constant 0 : index
    %77 = vector.load %arg9[%c0_33, %c0_34] : memref<128x2xbf16, #tpu.memory_space<vmem>>, vector<128x2xbf16>
    %cst_35 = arith.constant dense<0.000000e+00> : vector<16x2xf32>
    %78 = tpu.matmul %76, %77, %cst_35 {dimension_numbers = #tpu.dot_dimension_numbers<[1], [0], [0], [1], [0, 0, 1, 1], [], []>} : vector<16x128xbf16>, vector<128x2xbf16>, vector<16x2xf32> -> vector<16x2xf32>
    %79 = vector.extract_strided_slice %78 {offsets = [0, 0], sizes = [16, 1], strides = [1, 1]} : vector<16x2xf32> to vector<16x1xf32>
    %80 = vector.extract_strided_slice %78 {offsets = [0, 1], sizes = [16, 1], strides = [1, 1]} : vector<16x2xf32> to vector<16x1xf32>
    %81 = tpu.transpose %79, [1, 0] : vector<16x1xf32> -> vector<1x16xf32>
    %82 = vector.broadcast %80 : vector<16x1xf32> to vector<16x16xf32>
    %83 = vector.broadcast %81 : vector<1x16xf32> to vector<16x16xf32>
    %84 = arith.addf %82, %83 : vector<16x16xf32>
    %cst_36 = arith.constant 2.000000e-01 : f32
    %85 = vector.broadcast %cst_36 : f32 to vector<16x16xf32>
    %86 = arith.mulf %85, %84 : vector<16x16xf32>
    %87 = arith.maximumf %84, %86 : vector<16x16xf32>
    %88 = arith.addf %87, %5 : vector<16x16xf32>
    %cst_37 = arith.constant dense<0xFF800000> : vector<16xf32>
    %89 = vector.multi_reduction <maximumf>, %88, %cst_37 [1] : vector<16x16xf32> to vector<16xf32>
    %90 = vector.shape_cast %89 : vector<16xf32> to vector<16x1xf32>
    %91 = vector.broadcast %90 : vector<16x1xf32> to vector<16x16xf32>
    %92 = arith.subf %88, %91 : vector<16x16xf32>
    %93 = math.exp %92 : vector<16x16xf32>
    %94 = arith.truncf %93 : vector<16x16xf32> to vector<16x16xbf16>
    %cst_38 = arith.constant dense<0.000000e+00> : vector<16x128xf32>
    %95 = tpu.matmul %94, %76, %cst_38 {dimension_numbers = #tpu.dot_dimension_numbers<[1], [0], [0], [1], [0, 0, 1, 1], [], []>} : vector<16x16xbf16>, vector<16x128xbf16>, vector<16x128xf32> -> vector<16x128xf32>
    %cst_39 = arith.constant dense<0.000000e+00> : vector<16xf32>
    %96 = vector.multi_reduction <add>, %93, %cst_39 [1] : vector<16x16xf32> to vector<16xf32>
    %97 = vector.shape_cast %96 : vector<16xf32> to vector<16x1xf32>
    %98 = tpu.reciprocal %97 {approx = true} : vector<16x1xf32> -> vector<16x1xf32>
    %99 = vector.broadcast %98 : vector<16x1xf32> to vector<16x128xf32>
    %100 = arith.mulf %95, %99 : vector<16x128xf32>
    %c0_40 = arith.constant 0 : index
    %c0_41 = arith.constant 0 : index
    %101 = vector.load %arg10[%c0_40, %c0_41] : memref<1x128xf32, #tpu.memory_space<vmem>>, vector<1x128xf32>
    %102 = vector.broadcast %101 : vector<1x128xf32> to vector<16x128xf32>
    %103 = arith.addf %100, %102 : vector<16x128xf32>
    %104 = tpu.iota {dimensions = array<i32: 1>} : vector<1x128xi32>
    %c8_i32 = arith.constant 8 : i32
    %105 = vector.broadcast %c8_i32 : i32 to vector<1x128xi32>
    %106 = arith.cmpi slt, %104, %105 : vector<1x128xi32>
    %cst_42 = arith.constant 0xFF800000 : f32
    %107 = vector.shape_cast %106 : vector<1x128xi1> to vector<1x128xi1>
    %108 = vector.broadcast %107 : vector<1x128xi1> to vector<16x128xi1>
    %109 = vector.broadcast %cst_42 : f32 to vector<16x128xf32>
    %110 = arith.select %108, %103, %109 : vector<16x128xi1>, vector<16x128xf32>
    %cst_43 = arith.constant dense<0xFF800000> : vector<16xf32>
    %111 = vector.multi_reduction <maximumf>, %110, %cst_43 [1] : vector<16x128xf32> to vector<16xf32>
    %112 = vector.shape_cast %111 : vector<16xf32> to vector<16x1xf32>
    %113 = vector.broadcast %112 : vector<16x1xf32> to vector<16x128xf32>
    %114 = arith.subf %110, %113 : vector<16x128xf32>
    %115 = math.exp %114 : vector<16x128xf32>
    %cst_44 = arith.constant dense<0.000000e+00> : vector<16xf32>
    %116 = vector.multi_reduction <add>, %115, %cst_44 [1] : vector<16x128xf32> to vector<16xf32>
    %117 = vector.shape_cast %116 : vector<16xf32> to vector<16x1xf32>
    %118 = vector.broadcast %117 : vector<16x1xf32> to vector<16x128xf32>
    %119 = arith.divf %115, %118 : vector<16x128xf32>
    %c0_45 = arith.constant 0 : index
    %c0_46 = arith.constant 0 : index
    %120 = vector.load %arg11[%c0_45, %c0_46] : memref<16x128xf32, #tpu.memory_space<vmem>>, vector<16x128xf32>
    tpu.vector_store %arg11[%c0_45, %c0_46], %119 {strides = array<i32>} : memref<16x128xf32, #tpu.memory_space<vmem>>, vector<16x128xf32>,
    return
  }
}

</mosaic_0001>

<llo_original>
// kernel: tpu_custom_call.1
$region0: #{tpu_custom_call.1}
  #allocation0 [shape = 'u32[]', space=smem, size = 0x4, offset = 0x4, fixed_abs, tag = 'smem constant byte address 0x4 - core index']
  #allocation1 [shape = 'u32[144,128]{1,0:T(1,128)}', space=vmem, size = 0x12000, scoped, tag = 'internal scratch']
  %s0 = inlined_call_operand.vmem [shape: f32[16,32], index: 0, kind: input, shape index: {}]
  %s1 = inlined_call_operand.vmem [shape: bf16[16,16], index: 1, kind: input, shape index: {}]
  %s2 = inlined_call_operand.vmem [shape: bf16[32,512], index: 2, kind: input, shape index: {}]
  %s3 = inlined_call_operand.vmem [shape: bf16[32,2], index: 3, kind: input, shape index: {}]
  %s4 = inlined_call_operand.vmem [shape: f32[1,512], index: 4, kind: input, shape index: {}]
  %s5 = inlined_call_operand.hbm [shape: bf16[512,256], index: 5, kind: input, shape index: {}]
  %s6 = inlined_call_operand.vmem [shape: bf16[256,2], index: 6, kind: input, shape index: {}]
  %s7 = inlined_call_operand.vmem [shape: f32[1,256], index: 7, kind: input, shape index: {}]
  %s8 = inlined_call_operand.vmem [shape: bf16[256,128], index: 8, kind: input, shape index: {}]
  %s9 = inlined_call_operand.vmem [shape: bf16[128,2], index: 9, kind: input, shape index: {}]
  %s10 = inlined_call_operand.vmem [shape: f32[1,128], index: 10, kind: input, shape index: {}]
  %s11 = inlined_call_operand.hbm [shape: f32[16,128], index: 11, kind: output, shape index: {}]
  %s12 = sld [smem:[#allocation0]]
  $region58: #{tpu_custom_call.1} parent=0
    _
  %s14 = ssub.s32 1, %s12
  %s15 = scalar_select 0, %s14, %s12
  $region1: #{tpu_custom_call.1} parent=0
    #allocation2 [shape = 'u8[262144]{0}', space=vmem, size = 0x40000, scoped, tag = 'input window, operand 5, single buffered']
    #allocation3 [shape = 's32[1]{0}', space=sflag, size = 0x4, scoped, tag = 'scoped memory for tpu_custom_call.1']
    #allocation4 [shape = 's32[1]{0}', space=sflag, size = 0x4, scoped, tag = 'scoped memory for tpu_custom_call.1']
    #allocation5 [shape = 'u8[8192]{0}', space=vmem, size = 0x2000, scoped, tag = 'output window, operand 0, single buffered']
    %16 = vsyncpa [#allocation3], 0
    %17 = vsyncpa [#allocation4], 0
    // Predicated region
    $region2: #{tpu_custom_call.1} parent=1 // pred_check
      _
    $region3: #{tpu_custom_call.1} parent=1 // pred_check_branch
      %19 = sbr.rel (0) target = $region5
    $region4: #{tpu_custom_call.1} parent=1 // pred_region
      _
    $region5: #{tpu_custom_call.1} parent=1 // pred_fallthru
      _
    // Predicated region
    $region6: #{tpu_custom_call.1} parent=1 // pred_check
      _
    $region7: #{tpu_custom_call.1} parent=1 // pred_check_branch
      %21 = sbr.rel (0) target = $region9
    $region8: #{tpu_custom_call.1} parent=1 // pred_region
      _
    $region9: #{tpu_custom_call.1} parent=1 // pred_fallthru
      _
    // Predicated region
    $region10: #{tpu_custom_call.1} parent=1 // pred_check
      _
    $region11: #{tpu_custom_call.1} parent=1 // pred_check_branch
      %23 = sbr.rel (0) target = $region13
    $region12: #{tpu_custom_call.1} parent=1 // pred_region
      _
    $region13: #{tpu_custom_call.1} parent=1 // pred_fallthru
      _
    // Predicated region
    $region14: #{tpu_custom_call.1} parent=1 // pred_check
      _
    $region15: #{tpu_custom_call.1} parent=1 // pred_check_branch
      %25 = sbr.rel (0) target = $region17
    $region16: #{tpu_custom_call.1} parent=1 // pred_region
      _
    $region17: #{tpu_custom_call.1} parent=1 // pred_fallthru
      _
    // Predicated region
    $region18: #{tpu_custom_call.1} parent=1 // pred_check
      _
    $region19: #{tpu_custom_call.1} parent=1 // pred_check_branch
      %27 = sbr.rel (0) target = $region21
    $region20: #{tpu_custom_call.1} parent=1 // pred_region
      _
    $region21: #{tpu_custom_call.1} parent=1 // pred_fallthru
      _
    // Predicated region
    $region22: #{tpu_custom_call.1} parent=1 // pred_check
      _
    $region23: #{tpu_custom_call.1} parent=1 // pred_check_branch
      %29 = sbr.rel (0) target = $region25
    $region24: #{tpu_custom_call.1} parent=1 // pred_region
      %s31 = ssub.s32 8192, 8192
      %32 = vsyncadd [#allocation3], %s31
      %s33 = sshll.u32 [#allocation2], 4
      %s34 = int_to_ptr.vmem [resolvable:$true] %s33
      %39 = dma.hbm_to_vmem [thread:$0]  %s5, 8192, %s34, [#allocation3], 128, 128, 8
    $region25: #{tpu_custom_call.1} parent=1 // pred_fallthru
      _
    // Predicated region
    $region26: #{tpu_custom_call.1} parent=1 // pred_check
      _
    $region27: #{tpu_custom_call.1} parent=1 // pred_check_branch
      %41 = sbr.rel (0) target = $region29
    $region28: #{tpu_custom_call.1} parent=1 // pred_region
      _
    $region29: #{tpu_custom_call.1} parent=1 // pred_fallthru
      _
    // Predicated region
    $region30: #{tpu_custom_call.1} parent=1 // pred_check
      _
    $region31: #{tpu_custom_call.1} parent=1 // pred_check_branch
      %43 = sbr.rel (0) target = $region33
    $region32: #{tpu_custom_call.1} parent=1 // pred_region
      _
    $region33: #{tpu_custom_call.1} parent=1 // pred_fallthru
      _
    // Predicated region
    $region34: #{tpu_custom_call.1} parent=1 // pred_check
      _
    $region35: #{tpu_custom_call.1} parent=1 // pred_check_branch
      %45 = sbr.rel (0) target = $region37
    $region36: #{tpu_custom_call.1} parent=1 // pred_region
      _
    $region37: #{tpu_custom_call.1} parent=1 // pred_fallthru
      _
    // Predicated region
    $region38: #{tpu_custom_call.1} parent=1 // pred_check
      _
    $region39: #{tpu_custom_call.1} parent=1 // pred_check_branch
      %47 = sbr.rel (0) target = $region41
    $region40: #{tpu_custom_call.1} parent=1 // pred_region
      _
    $region41: #{tpu_custom_call.1} parent=1 // pred_fallthru
      _
    // Predicated region
    $region42: #{tpu_custom_call.1} parent=1 // pred_check
      _
    $region43: #{tpu_custom_call.1} parent=1 // pred_check_branch
      %49 = sbr.rel (0) target = $region45
    $region44: #{tpu_custom_call.1} parent=1 // pred_region
      _
    $region45: #{tpu_custom_call.1} parent=1 // pred_fallthru
      _
    // Predicated region
    $region46: #{tpu_custom_call.1} parent=1 // pred_check
      _
    $region47: #{tpu_custom_call.1} parent=1 // pred_check_branch
      %51 = sbr.rel (0) target = $region49
    $region48: #{tpu_custom_call.1} parent=1 // pred_region
      %52 = dma.done [#allocation3], 8192
    $region49: #{tpu_custom_call.1} parent=1 // pred_fallthru
      _
    %v54 = vld [vmem:[%s1] sm:$0xf]
    %v55 = vld [vmem:[%s1 + $0x4] sm:$0xf]
    %v56 = vunpack.c.l.bf16 %v54
    %v57 = vunpack.c.l.bf16 %v55
    %v58 = vsub.f32 %v56, 1.0
    %v59 = vsub.f32 %v57, 1.0
    %v60 = vmul.f32 %v58, 1e+30
    %v61 = vmul.f32 %v59, 1e+30
    %v62 = vld [vmem:[%s0] sm:$0xff]
    %v63 = vld [vmem:[%s0 + $0x8] sm:$0xff]
    %v64 = vpack.c.bf16 %v63, %v62
    %v65 = vld [vmem:[%s2] sm:$0xff]
    %v66 = vld [vmem:[%s2 + $0x8] sm:$0xff]
    %v67 = vld [vmem:[%s2 + $0x10] sm:$0xff]
    %v68 = vld [vmem:[%s2 + $0x18] sm:$0xff]
    %v69 = vld [vmem:[%s2 + $0x20] sm:$0xff]
    %v70 = vld [vmem:[%s2 + $0x28] sm:$0xff]
    %v71 = vld [vmem:[%s2 + $0x30] sm:$0xff]
    %v72 = vld [vmem:[%s2 + $0x38] sm:$0xff]
    %v81 = vunpack.c.l.b16 %v65
    %v82 = vunpack.c.h.b16 %v65
    %v83 = vunpack.c.l.b16 %v66
    %v84 = vunpack.c.h.b16 %v66
    %v85 = vunpack.c.l.b16 %v67
    %v86 = vunpack.c.h.b16 %v67
    %v87 = vunpack.c.l.b16 %v68
    %v88 = vunpack.c.h.b16 %v68
    %v89 = vunpack.c.l.b16 %v69
    %v90 = vunpack.c.h.b16 %v69
    %v91 = vunpack.c.l.b16 %v70
    %v92 = vunpack.c.h.b16 %v70
    %v93 = vunpack.c.l.b16 %v71
    %v94 = vunpack.c.h.b16 %v71
    %v95 = vunpack.c.l.b16 %v72
    %v96 = vunpack.c.h.b16 %v72
    %v97 = vpack.c.b16 %v85, %v81
    %v98 = vpack.c.b16 %v86, %v82
    %v99 = vpack.c.b16 %v87, %v83
    %v100 = vpack.c.b16 %v88, %v84
    %v101 = vpack.c.b16 %v93, %v89
    %v102 = vpack.c.b16 %v94, %v90
    %v103 = vpack.c.b16 %v95, %v91
    %v104 = vpack.c.b16 %v96, %v92
    %vm113 = vcmask 261120
    %v115 = vsel %vm113, %v64, 0
    %117 = vmatprep.subr.bf16.mxu0 %v98
    %118 = vmatpush1.bf16.msra.mxu0 %v97
    %119 = vmatprep.subr.bf16.mxu0 %v102
    %120 = vmatpush1.bf16.msra.mxu0 %v101
    %121 = vmatprep.subr.bf16.mxu0 0
    %122 = vmatpush1.bf16.msra.mxu0 0
    %123 = vmatprep.subr.bf16.mxu0 0
    %124 = vmatpush1.bf16.msra.mxu0 0
    %125 = vmatprep.subr.bf16.mxu0 0
    %126 = vmatpush1.bf16.msra.mxu0 0
    %127 = vmatprep.subr.bf16.mxu0 0
    %128 = vmatpush1.bf16.msra.mxu0 0
    %129 = vmatprep.subr.bf16.mxu0 0
    %130 = vmatpush1.bf16.msra.mxu0 0
    %131 = vmatprep.subr.bf16.mxu0 0
    %132 = vmatpush1.bf16.msra.mxu0 0
    %133 = vmatprep.subr.bf16.mxu0 0
    %134 = vmatpush1.bf16.msra.mxu0 0
    %135 = vmatprep.subr.bf16.mxu0 0
    %136 = vmatpush1.bf16.msra.mxu0 0
    %137 = vmatprep.subr.bf16.mxu0 0
    %138 = vmatpush1.bf16.msra.mxu0 0
    %139 = vmatprep.subr.bf16.mxu0 0
    %140 = vmatpush1.bf16.msra.mxu0 0
    %141 = vmatprep.subr.bf16.mxu0 0
    %142 = vmatpush1.bf16.msra.mxu0 0
    %143 = vmatprep.subr.bf16.mxu0 0
    %144 = vmatpush1.bf16.msra.mxu0 0
    %145 = vmatprep.subr.bf16.mxu0 0
    %146 = vmatpush1.bf16.msra.mxu0 0
    %147 = vmatprep.subr.bf16.mxu0 0
    %148 = vmatpush1.bf16.msra.mxu0 0
    %149 = vmatprep.mubr.bf16.mxu0 0
    %150 = vmatmul.mubr.bf16.gmra.mrb[0].mxu0 %v115
    %v151 = vpop.f32.mrb[0].mxu0
    %v152 = vadd.f32 0.0, %v151
    %v153 = vpop.f32.mrb[0].mxu0
    %v154 = vadd.f32 0.0, %v153
    %v155 = vpop.f32.mrb[0].mxu0
    %v156 = vadd.f32 0.0, %v155
    %v157 = vpop.f32.mrb[0].mxu0
    %v158 = vadd.f32 0.0, %v157
    %159 = vdwg.mxu0
    %160 = vmatprep.subr.bf16.mxu0 %v100
    %161 = vmatpush1.bf16.msra.mxu0 %v99
    %162 = vmatprep.subr.bf16.mxu0 %v104
    %163 = vmatpush1.bf16.msra.mxu0 %v103
    %164 = vmatprep.subr.bf16.mxu0 0
    %165 = vmatpush1.bf16.msra.mxu0 0
    %166 = vmatprep.subr.bf16.mxu0 0
    %167 = vmatpush1.bf16.msra.mxu0 0
    %168 = vmatprep.subr.bf16.mxu0 0
    %169 = vmatpush1.bf16.msra.mxu0 0
    %170 = vmatprep.subr.bf16.mxu0 0
    %171 = vmatpush1.bf16.msra.mxu0 0
    %172 = vmatprep.subr.bf16.mxu0 0
    %173 = vmatpush1.bf16.msra.mxu0 0
    %174 = vmatprep.subr.bf16.mxu0 0
    %175 = vmatpush1.bf16.msra.mxu0 0
    %176 = vmatprep.subr.bf16.mxu0 0
    %177 = vmatpush1.bf16.msra.mxu0 0
    %178 = vmatprep.subr.bf16.mxu0 0
    %179 = vmatpush1.bf16.msra.mxu0 0
    %180 = vmatprep.subr.bf16.mxu0 0
    %181 = vmatpush1.bf16.msra.mxu0 0
    %182 = vmatprep.subr.bf16.mxu0 0
    %183 = vmatpush1.bf16.msra.mxu0 0
    %184 = vmatprep.subr.bf16.mxu0 0
    %185 = vmatpush1.bf16.msra.mxu0 0
    %186 = vmatprep.subr.bf16.mxu0 0
    %187 = vmatpush1.bf16.msra.mxu0 0
    %188 = vmatprep.subr.bf16.mxu0 0
    %189 = vmatpush1.bf16.msra.mxu0 0
    %190 = vmatprep.subr.bf16.mxu0 0
    %191 = vmatpush1.bf16.msra.mxu0 0
    %192 = vmatprep.mubr.bf16.mxu0 0
    %193 = vmatmul.mubr.bf16.gmra.mrb[0].mxu0 %v115
    %v194 = vpop.f32.mrb[0].mxu0
    %v195 = vadd.f32 0.0, %v194
    %v196 = vpop.f32.mrb[0].mxu0
    %v197 = vadd.f32 0.0, %v196
    %v198 = vpop.f32.mrb[0].mxu0
    %v199 = vadd.f32 0.0, %v198
    %v200 = vpop.f32.mrb[0].mxu0
    %v201 = vadd.f32 0.0, %v200
    %202 = vdwg.mxu0
    %v203 = vpack.c.bf16 %v156, %v152
    %v204 = vpack.c.bf16 %v158, %v154
    %v205 = vpack.c.bf16 %v199, %v195
    %v206 = vpack.c.bf16 %v201, %v197
    %v207 = vld [vmem:[%s3] sm:$0xf]
    %v208 = vld [vmem:[%s3 + $0x4] sm:$0xf]
    %v209 = vld [vmem:[%s3 + $0x8] sm:$0xf]
    %v210 = vld [vmem:[%s3 + $0xc] sm:$0xf]
    %v215 = vunpack.c.l.b16 %v207
    %v216 = vunpack.c.l.b16 %v208
    %v217 = vunpack.c.l.b16 %v209
    %v218 = vunpack.c.l.b16 %v210
    %v219 = vpack.c.b16 %v216, %v215
    %v220 = vpack.c.b16 %v218, %v217
    %223 = vmatprep.subr.bf16.mxu0 0
    %224 = vmatpush1.bf16.msra.mxu0 %v219
    %225 = vmatprep.subr.bf16.mxu0 0
    %226 = vmatpush1.bf16.msra.mxu0 %v220
    %227 = vmatprep.subr.bf16.mxu0 0
    %228 = vmatpush1.bf16.msra.mxu0 0
    %229 = vmatprep.subr.bf16.mxu0 0
    %230 = vmatpush1.bf16.msra.mxu0 0
    %231 = vmatprep.subr.bf16.mxu0 0
    %232 = vmatpush1.bf16.msra.mxu0 0
    %233 = vmatprep.subr.bf16.mxu0 0
    %234 = vmatpush1.bf16.msra.mxu0 0
    %235 = vmatprep.subr.bf16.mxu0 0
    %236 = vmatpush1.bf16.msra.mxu0 0
    %237 = vmatprep.subr.bf16.mxu0 0
    %238 = vmatpush1.bf16.msra.mxu0 0
    %239 = vmatprep.subr.bf16.mxu0 0
    %240 = vmatpush1.bf16.msra.mxu0 0
    %241 = vmatprep.subr.bf16.mxu0 0
    %242 = vmatpush1.bf16.msra.mxu0 0
    %243 = vmatprep.subr.bf16.mxu0 0
    %244 = vmatpush1.bf16.msra.mxu0 0
    %245 = vmatprep.subr.bf16.mxu0 0
    %246 = vmatpush1.bf16.msra.mxu0 0
    %247 = vmatprep.subr.bf16.mxu0 0
    %248 = vmatpush1.bf16.msra.mxu0 0
    %249 = vmatprep.subr.bf16.mxu0 0
    %250 = vmatpush1.bf16.msra.mxu0 0
    %251 = vmatprep.subr.bf16.mxu0 0
    %252 = vmatpush1.bf16.msra.mxu0 0
    %253 = vmatprep.subr.bf16.mxu0 0
    %254 = vmatpush1.bf16.msra.mxu0 0
    %255 = vmatprep.mubr.bf16.mxu0 0
    %256 = vmatmul.mubr.bf16.gmra.mrb[0].mxu0 %v115
    %v257 = vpop.f32.mrb[0].mxu0
    %v258 = vadd.f32 0.0, %v257
    %v259 = vpop.f32.mrb[0].mxu0
    %v260 = vpop.f32.mrb[0].mxu0
    %v261 = vadd.f32 0.0, %v260
    %v262 = vpop.f32.mrb[0].mxu0
    %263 = vdwg.mxu0
    %264 = vxpose.xlu0.b32.start [1/16] %v258, 128
    %265 = vxpose.xlu0.b32.cont [2/16] %v261, 128
    %266 = vxpose.xlu0.b32.cont [3/16] 0.0, 128
    %267 = vxpose.xlu0.b32.cont [4/16] 0.0, 128
    %268 = vxpose.xlu0.b32.cont [5/16] 0.0, 128
    %269 = vxpose.xlu0.b32.cont [6/16] 0.0, 128
    %270 = vxpose.xlu0.b32.cont [7/16] 0.0, 128
    %271 = vxpose.xlu0.b32.cont [8/16] 0.0, 128
    %272 = vxpose.xlu0.b32.cont [9/16] 0.0, 128
    %273 = vxpose.xlu0.b32.cont [10/16] 0.0, 128
    %274 = vxpose.xlu0.b32.cont [11/16] 0.0, 128
    %275 = vxpose.xlu0.b32.cont [12/16] 0.0, 128
    %276 = vxpose.xlu0.b32.cont [13/16] 0.0, 128
    %277 = vxpose.xlu0.b32.cont [14/16] 0.0, 128
    %278 = vxpose.xlu0.b32.cont [15/16] 0.0, 128
    %279 = vxpose.xlu0.b32.end [16/16] 0.0, 128
    %v280 = vpop.trf.xlu0
    %v281 = vpop.trf.xlu0
    %v282 = vpop.trf.xlu0
    %v283 = vpop.trf.xlu0
    %v284 = vpop.trf.xlu0
    %v285 = vpop.trf.xlu0
    %v286 = vpop.trf.xlu0
    %v287 = vpop.trf.xlu0
    %v288 = vpop.trf.xlu0
    %v289 = vpop.trf.xlu0
    %v290 = vpop.trf.xlu0
    %v291 = vpop.trf.xlu0
    %v292 = vpop.trf.xlu0
    %v293 = vpop.trf.xlu0
    %v294 = vpop.trf.xlu0
    %v295 = vpop.trf.xlu0
    %297 = vset.pattern.permute.xlu0 1
    %298 = vperm.xlu0 %297, %v258
    %v299 = vpop.permute.xlu0 %298
    %302 = vset.pattern.permute.xlu0 1
    %303 = vperm.xlu0 %302, %v261
    %v304 = vpop.permute.xlu0 %303
    %v306 = vlaneseq
    %v307 = vshrl.u32 %v306, 7
    %v308 = vsub.s32 0, %v307
    %v309 = vrot.slane %v280, %v308
    %v310 = vadd.f32 %v299, %v309
    %v311 = vadd.f32 %v304, %v309
    %v312 = vmul.f32 %v310, 0.2
    %v313 = vmul.f32 %v311, 0.2
    %v314 = vmax.f32 %v310, %v312
    %v315 = vmax.f32 %v311, %v313
    %v316 = vadd.f32 %v314, %v60
    %v317 = vadd.f32 %v315, %v61
    %vm318 = vcmask 130048
    %v319 = vsel %vm318, %v316, -inf
    %320 = vmax.xlane.f32.xlu0 %v319
    %v321 = vpop.xlane.xlu0 %320
    %v322 = vsel %vm318, %v317, -inf
    %323 = vmax.xlane.f32.xlu0 %v322
    %v324 = vpop.xlane.xlu0 %323
    %v325 = vsub.f32 %v316, %v321
    %v326 = vsub.f32 %v317, %v324
    %v327 = vmul.f32 %v325, 1.442695
    %v328 = vpow.pop %v327
    %v329 = vmul.f32 %v326, 1.442695
    %v330 = vpow.pop %v329
    %v331 = vpack.c.bf16 %v330, %v328
    %v333 = vsel %vm318, %v331, 0
    %335 = vmatprep.subr.bf16.mxu0 %v204
    %336 = vmatpush1.bf16.msra.mxu0 %v203
    %337 = vmatprep.subr.bf16.mxu0 0
    %338 = vmatpush1.bf16.msra.mxu0 0
    %339 = vmatprep.subr.bf16.mxu0 0
    %340 = vmatpush1.bf16.msra.mxu0 0
    %341 = vmatprep.subr.bf16.mxu0 0
    %342 = vmatpush1.bf16.msra.mxu0 0
    %343 = vmatprep.subr.bf16.mxu0 0
    %344 = vmatpush1.bf16.msra.mxu0 0
    %345 = vmatprep.subr.bf16.mxu0 0
    %346 = vmatpush1.bf16.msra.mxu0 0
    %347 = vmatprep.subr.bf16.mxu0 0
    %348 = vmatpush1.bf16.msra.mxu0 0
    %349 = vmatprep.subr.bf16.mxu0 0
    %350 = vmatpush1.bf16.msra.mxu0 0
    %351 = vmatprep.subr.bf16.mxu0 0
    %352 = vmatpush1.bf16.msra.mxu0 0
    %353 = vmatprep.subr.bf16.mxu0 0
    %354 = vmatpush1.bf16.msra.mxu0 0
    %355 = vmatprep.subr.bf16.mxu0 0
    %356 = vmatpush1.bf16.msra.mxu0 0
    %357 = vmatprep.subr.bf16.mxu0 0
    %358 = vmatpush1.bf16.msra.mxu0 0
    %359 = vmatprep.subr.bf16.mxu0 0
    %360 = vmatpush1.bf16.msra.mxu0 0
    %361 = vmatprep.subr.bf16.mxu0 0
    %362 = vmatpush1.bf16.msra.mxu0 0
    %363 = vmatprep.subr.bf16.mxu0 0
    %364 = vmatpush1.bf16.msra.mxu0 0
    %365 = vmatprep.subr.bf16.mxu0 0
    %366 = vmatpush1.bf16.msra.mxu0 0
    %367 = vmatprep.mubr.bf16.mxu0 0
    %368 = vmatmul.mubr.bf16.gmra.mrb[0].mxu0 %v333
    %v369 = vpop.f32.mrb[0].mxu0
    %v370 = vadd.f32 0.0, %v369
    %v371 = vpop.f32.mrb[0].mxu0
    %v372 = vadd.f32 0.0, %v371
    %v373 = vpop.f32.mrb[0].mxu0
    %v374 = vadd.f32 0.0, %v373
    %v375 = vpop.f32.mrb[0].mxu0
    %v376 = vadd.f32 0.0, %v375
    %377 = vdwg.mxu0
    %378 = vmatprep.subr.bf16.mxu0 %v206
    %379 = vmatpush1.bf16.msra.mxu0 %v205
    %380 = vmatprep.subr.bf16.mxu0 0
    %381 = vmatpush1.bf16.msra.mxu0 0
    %382 = vmatprep.subr.bf16.mxu0 0
    %383 = vmatpush1.bf16.msra.mxu0 0
    %384 = vmatprep.subr.bf16.mxu0 0
    %385 = vmatpush1.bf16.msra.mxu0 0
    %386 = vmatprep.subr.bf16.mxu0 0
    %387 = vmatpush1.bf16.msra.mxu0 0
    %388 = vmatprep.subr.bf16.mxu0 0
    %389 = vmatpush1.bf16.msra.mxu0 0
    %390 = vmatprep.subr.bf16.mxu0 0
    %391 = vmatpush1.bf16.msra.mxu0 0
    %392 = vmatprep.subr.bf16.mxu0 0
    %393 = vmatpush1.bf16.msra.mxu0 0
    %394 = vmatprep.subr.bf16.mxu0 0
    %395 = vmatpush1.bf16.msra.mxu0 0
    %396 = vmatprep.subr.bf16.mxu0 0
    %397 = vmatpush1.bf16.msra.mxu0 0
    %398 = vmatprep.subr.bf16.mxu0 0
    %399 = vmatpush1.bf16.msra.mxu0 0
    %400 = vmatprep.subr.bf16.mxu0 0
    %401 = vmatpush1.bf16.msra.mxu0 0
    %402 = vmatprep.subr.bf16.mxu0 0
    %403 = vmatpush1.bf16.msra.mxu0 0
    %404 = vmatprep.subr.bf16.mxu0 0
    %405 = vmatpush1.bf16.msra.mxu0 0
    %406 = vmatprep.subr.bf16.mxu0 0
    %407 = vmatpush1.bf16.msra.mxu0 0
    %408 = vmatprep.subr.bf16.mxu0 0
    %409 = vmatpush1.bf16.msra.mxu0 0
    %410 = vmatprep.mubr.bf16.mxu0 0
    %411 = vmatmul.mubr.bf16.gmra.mrb[0].mxu0 %v333
    %v412 = vpop.f32.mrb[0].mxu0
    %v413 = vadd.f32 0.0, %v412
    %v414 = vpop.f32.mrb[0].mxu0
    %v415 = vadd.f32 0.0, %v414
    %v416 = vpop.f32.mrb[0].mxu0
    %v417 = vadd.f32 0.0, %v416
    %v418 = vpop.f32.mrb[0].mxu0
    %v419 = vadd.f32 0.0, %v418
    %420 = vdwg.mxu0
    %v421 = vsel %vm318, %v328, 0.0
    %422 = vadd.xlane.f32.xlu0 %v421
    %v423 = vpop.xlane.xlu0 %422
    %v424 = vsel %vm318, %v330, 0.0
    %425 = vadd.xlane.f32.xlu0 %v424
    %v426 = vpop.xlane.xlu0 %425
    %v427 = vrcp.pop %v423
    %v428 = vrcp.pop %v426
    %v429 = vmul.f32 %v370, %v427
    %v430 = vmul.f32 %v372, %v427
    %v431 = vmul.f32 %v413, %v427
    %v432 = vmul.f32 %v415, %v427
    %v433 = vmul.f32 %v374, %v428
    %v434 = vmul.f32 %v376, %v428
    %v435 = vmul.f32 %v417, %v428
    %v436 = vmul.f32 %v419, %v428
    %v437 = vld [vmem:[%s4] sm:$0xf]
    %v439 = vlaneseq
    %v440 = vshrl.u32 %v439, 7
    %v441 = vsub.s32 0, %v440
    %v442 = vrot.slane %v437, %v441
    %v443 = vlaneseq
    %v444 = vshrl.u32 %v443, 7
    %v445 = vsub.s32 1, %v444
    %v446 = vrot.slane %v437, %v445
    %v447 = vlaneseq
    %v448 = vshrl.u32 %v447, 7
    %v449 = vsub.s32 2, %v448
    %v450 = vrot.slane %v437, %v449
    %v451 = vlaneseq
    %v452 = vshrl.u32 %v451, 7
    %v453 = vsub.s32 3, %v452
    %v454 = vrot.slane %v437, %v453
    %v459 = vadd.f32 %v429, %v442
    %v460 = vadd.f32 %v430, %v446
    %v461 = vadd.f32 %v431, %v450
    %v462 = vadd.f32 %v432, %v454
    %v463 = vadd.f32 %v433, %v442
    %v464 = vadd.f32 %v434, %v446
    %v465 = vadd.f32 %v435, %v450
    %v466 = vadd.f32 %v436, %v454
    %v467 = vmax.f32 %v459, 0.0
    %v468 = vmax.f32 %v460, 0.0
    %v469 = vmax.f32 %v461, 0.0
    %v470 = vmax.f32 %v462, 0.0
    %v471 = vmax.f32 %v463, 0.0
    %v472 = vmax.f32 %v464, 0.0
    %v473 = vmax.f32 %v465, 0.0
    %v474 = vmax.f32 %v466, 0.0
    %v475 = vpack.c.bf16 %v471, %v467
    %v476 = vpack.c.bf16 %v472, %v468
    %v477 = vpack.c.bf16 %v473, %v469
    %v478 = vpack.c.bf16 %v474, %v470
    %v479 = vld [vmem:[#allocation2] sm:$0xff]
    %v480 = vld [vmem:[#allocation2 + $0x8] sm:$0xff]
    %v481 = vld [vmem:[#allocation2 + $0x10] sm:$0xff]
    %v482 = vld [vmem:[#allocation2 + $0x18] sm:$0xff]
    %v483 = vld [vmem:[#allocation2 + $0x20] sm:$0xff]
    %v484 = vld [vmem:[#allocation2 + $0x28] sm:$0xff]
    %v485 = vld [vmem:[#allocation2 + $0x30] sm:$0xff]
    %v486 = vld [vmem:[#allocation2 + $0x38] sm:$0xff]
    %v487 = vld [vmem:[#allocation2 + $0x40] sm:$0xff]
    %v488 = vld [vmem:[#allocation2 + $0x48] sm:$0xff]
    %v489 = vld [vmem:[#allocation2 + $0x50] sm:$0xff]
    %v490 = vld [vmem:[#allocation2 + $0x58] sm:$0xff]
    %v491 = vld [vmem:[#allocation2 + $0x60] sm:$0xff]
    %v492 = vld [vmem:[#allocation2 + $0x68] sm:$0xff]
    %v493 = vld [vmem:[#allocation2 + $0x70] sm:$0xff]
    %v494 = vld [vmem:[#allocation2 + $0x78] sm:$0xff]
    %v495 = vld [vmem:[#allocation2 + $0x80] sm:$0xff]
    %v496 = vld [vmem:[#allocation2 + $0x88] sm:$0xff]
    %v497 = vld [vmem:[#allocation2 + $0x90] sm:$0xff]
    %v498 = vld [vmem:[#allocation2 + $0x98] sm:$0xff]
    %v499 = vld [vmem:[#allocation2 + $0xa0] sm:$0xff]
    %v500 = vld [vmem:[#allocation2 + $0xa8] sm:$0xff]
    %v501 = vld [vmem:[#allocation2 + $0xb0] sm:$0xff]
    %v502 = vld [vmem:[#allocation2 + $0xb8] sm:$0xff]
    %v503 = vld [vmem:[#allocation2 + $0xc0] sm:$0xff]
    %v504 = vld [vmem:[#allocation2 + $0xc8] sm:$0xff]
    %v505 = vld [vmem:[#allocation2 + $0xd0] sm:$0xff]
    %v506 = vld [vmem:[#allocation2 + $0xd8] sm:$0xff]
    %v507 = vld [vmem:[#allocation2 + $0xe0] sm:$0xff]
    %v508 = vld [vmem:[#allocation2 + $0xe8] sm:$0xff]
    %v509 = vld [vmem:[#allocation2 + $0xf0] sm:$0xff]
    %v510 = vld [vmem:[#allocation2 + $0xf8] sm:$0xff]
    %v511 = vld [vmem:[#allocation2 + $0x100] sm:$0xff]
    %v512 = vld [vmem:[#allocation2 + $0x108] sm:$0xff]
    %v513 = vld [vmem:[#allocation2 + $0x110] sm:$0xff]
    %v514 = vld [vmem:[#allocation2 + $0x118] sm:$0xff]
    %v515 = vld [vmem:[#allocation2 + $0x120] sm:$0xff]
    %v516 = vld [vmem:[#allocation2 + $0x128] sm:$0xff]
    %v517 = vld [vmem:[#allocation2 + $0x130] sm:$0xff]
    %v518 = vld [vmem:[#allocation2 + $0x138] sm:$0xff]
    %v519 = vld [vmem:[#allocation2 + $0x140] sm:$0xff]
    %v520 = vld [vmem:[#allocation2 + $0x148] sm:$0xff]
    %v521 = vld [vmem:[#allocation2 + $0x150] sm:$0xff]
    %v522 = vld [vmem:[#allocation2 + $0x158] sm:$0xff]
    %v523 = vld [vmem:[#allocation2 + $0x160] sm:$0xff]
    %v524 = vld [vmem:[#allocation2 + $0x168] sm:$0xff]
    %v525 = vld [vmem:[#allocation2 + $0x170] sm:$0xff]
    %v526 = vld [vmem:[#allocation2 + $0x178] sm:$0xff]
    %v527 = vld [vmem:[#allocation2 + $0x180] sm:$0xff]
    %v528 = vld [vmem:[#allocation2 + $0x188] sm:$0xff]
    %v529 = vld [vmem:[#allocation2 + $0x190] sm:$0xff]
    %v530 = vld [vmem:[#allocation2 + $0x198] sm:$0xff]
    %v531 = vld [vmem:[#allocation2 + $0x1a0] sm:$0xff]
    %v532 = vld [vmem:[#allocation2 + $0x1a8] sm:$0xff]
    %v533 = vld [vmem:[#allocation2 + $0x1b0] sm:$0xff]
    %v534 = vld [vmem:[#allocation2 + $0x1b8] sm:$0xff]
    %v535 = vld [vmem:[#allocation2 + $0x1c0] sm:$0xff]
    %v536 = vld [vmem:[#allocation2 + $0x1c8] sm:$0xff]
    %v537 = vld [vmem:[#allocation2 + $0x1d0] sm:$0xff]
    %v538 = vld [vmem:[#allocation2 + $0x1d8] sm:$0xff]
    %v539 = vld [vmem:[#allocation2 + $0x1e0] sm:$0xff]
    %v540 = vld [vmem:[#allocation2 + $0x1e8] sm:$0xff]
    %v541 = vld [vmem:[#allocation2 + $0x1f0] sm:$0xff]
    %v542 = vld [vmem:[#allocation2 + $0x1f8] sm:$0xff]
    %v607 = vunpack.c.l.b16 %v479
    %v608 = vunpack.c.h.b16 %v479
    %v609 = vunpack.c.l.b16 %v480
    %v610 = vunpack.c.h.b16 %v480
    %v611 = vunpack.c.l.b16 %v481
    %v612 = vunpack.c.h.b16 %v481
    %v613 = vunpack.c.l.b16 %v482
    %v614 = vunpack.c.h.b16 %v482
    %v615 = vunpack.c.l.b16 %v483
    %v616 = vunpack.c.h.b16 %v483
    %v617 = vunpack.c.l.b16 %v484
    %v618 = vunpack.c.h.b16 %v484
    %v619 = vunpack.c.l.b16 %v485
    %v620 = vunpack.c.h.b16 %v485
    %v621 = vunpack.c.l.b16 %v486
    %v622 = vunpack.c.h.b16 %v486
    %v623 = vunpack.c.l.b16 %v487
    %v624 = vunpack.c.h.b16 %v487
    %v625 = vunpack.c.l.b16 %v488
    %v626 = vunpack.c.h.b16 %v488
    %v627 = vunpack.c.l.b16 %v489
    %v628 = vunpack.c.h.b16 %v489
    %v629 = vunpack.c.l.b16 %v490
    %v630 = vunpack.c.h.b16 %v490
    %v631 = vunpack.c.l.b16 %v491
    %v632 = vunpack.c.h.b16 %v491
    %v633 = vunpack.c.l.b16 %v492
    %v634 = vunpack.c.h.b16 %v492
    %v635 = vunpack.c.l.b16 %v493
    %v636 = vunpack.c.h.b16 %v493
    %v637 = vunpack.c.l.b16 %v494
    %v638 = vunpack.c.h.b16 %v494
    %v639 = vunpack.c.l.b16 %v495
    %v640 = vunpack.c.h.b16 %v495
    %v641 = vunpack.c.l.b16 %v496
    %v642 = vunpack.c.h.b16 %v496
    %v643 = vunpack.c.l.b16 %v497
    %v644 = vunpack.c.h.b16 %v497
    %v645 = vunpack.c.l.b16 %v498
    %v646 = vunpack.c.h.b16 %v498
    %v647 = vunpack.c.l.b16 %v499
    %v648 = vunpack.c.h.b16 %v499
    %v649 = vunpack.c.l.b16 %v500
    %v650 = vunpack.c.h.b16 %v500
    %v651 = vunpack.c.l.b16 %v501
    %v652 = vunpack.c.h.b16 %v501
    %v653 = vunpack.c.l.b16 %v502
    %v654 = vunpack.c.h.b16 %v502
    %v655 = vunpack.c.l.b16 %v503
    %v656 = vunpack.c.h.b16 %v503
    %v657 = vunpack.c.l.b16 %v504
    %v658 = vunpack.c.h.b16 %v504
    %v659 = vunpack.c.l.b16 %v505
    %v660 = vunpack.c.h.b16 %v505
    %v661 = vunpack.c.l.b16 %v506
    %v662 = vunpack.c.h.b16 %v506
    %v663 = vunpack.c.l.b16 %v507
    %v664 = vunpack.c.h.b16 %v507
    %v665 = vunpack.c.l.b16 %v508
    %v666 = vunpack.c.h.b16 %v508
    %v667 = vunpack.c.l.b16 %v509
    %v668 = vunpack.c.h.b16 %v509
    %v669 = vunpack.c.l.b16 %v510
    %v670 = vunpack.c.h.b16 %v510
    %v671 = vunpack.c.l.b16 %v511
    %v672 = vunpack.c.h.b16 %v511
    %v673 = vunpack.c.l.b16 %v512
    %v674 = vunpack.c.h.b16 %v512
    %v675 = vunpack.c.l.b16 %v513
    %v676 = vunpack.c.h.b16 %v513
    %v677 = vunpack.c.l.b16 %v514
    %v678 = vunpack.c.h.b16 %v514
    %v679 = vunpack.c.l.b16 %v515
    %v680 = vunpack.c.h.b16 %v515
    %v681 = vunpack.c.l.b16 %v516
    %v682 = vunpack.c.h.b16 %v516
    %v683 = vunpack.c.l.b16 %v517
    %v684 = vunpack.c.h.b16 %v517
    %v685 = vunpack.c.l.b16 %v518
    %v686 = vunpack.c.h.b16 %v518
    %v687 = vunpack.c.l.b16 %v519
    %v688 = vunpack.c.h.b16 %v519
    %v689 = vunpack.c.l.b16 %v520
    %v690 = vunpack.c.h.b16 %v520
    %v691 = vunpack.c.l.b16 %v521
    %v692 = vunpack.c.h.b16 %v521
    %v693 = vunpack.c.l.b16 %v522
    %v694 = vunpack.c.h.b16 %v522
    %v695 = vunpack.c.l.b16 %v523
    %v696 = vunpack.c.h.b16 %v523
    %v697 = vunpack.c.l.b16 %v524
    %v698 = vunpack.c.h.b16 %v524
    %v699 = vunpack.c.l.b16 %v525
    %v700 = vunpack.c.h.b16 %v525
    %v701 = vunpack.c.l.b16 %v526
    %v702 = vunpack.c.h.b16 %v526
    %v703 = vunpack.c.l.b16 %v527
    %v704 = vunpack.c.h.b16 %v527
    %v705 = vunpack.c.l.b16 %v528
    %v706 = vunpack.c.h.b16 %v528
    %v707 = vunpack.c.l.b16 %v529
    %v708 = vunpack.c.h.b16 %v529
    %v709 = vunpack.c.l.b16 %v530
    %v710 = vunpack.c.h.b16 %v530
    %v711 = vunpack.c.l.b16 %v531
    %v712 = vunpack.c.h.b16 %v531
    %v713 = vunpack.c.l.b16 %v532
    %v714 = vunpack.c.h.b16 %v532
    %v715 = vunpack.c.l.b16 %v533
    %v716 = vunpack.c.h.b16 %v533
    %v717 = vunpack.c.l.b16 %v534
    %v718 = vunpack.c.h.b16 %v534
    %v719 = vunpack.c.l.b16 %v535
    %v720 = vunpack.c.h.b16 %v535
    %v721 = vunpack.c.l.b16 %v536
    %v722 = vunpack.c.h.b16 %v536
    %v723 = vunpack.c.l.b16 %v537
    %v724 = vunpack.c.h.b16 %v537
    %v725 = vunpack.c.l.b16 %v538
    %v726 = vunpack.c.h.b16 %v538
    %v727 = vunpack.c.l.b16 %v539
    %v728 = vunpack.c.h.b16 %v539
    %v729 = vunpack.c.l.b16 %v540
    %v730 = vunpack.c.h.b16 %v540
    %v731 = vunpack.c.l.b16 %v541
    %v732 = vunpack.c.h.b16 %v541
    %v733 = vunpack.c.l.b16 %v542
    %v734 = vunpack.c.h.b16 %v542
    %v735 = vpack.c.b16 %v609, %v607
    %v736 = vpack.c.b16 %v610, %v608
    %v737 = vpack.c.b16 %v613, %v611
    %v738 = vpack.c.b16 %v614, %v612
    %v739 = vpack.c.b16 %v617, %v615
    %v740 = vpack.c.b16 %v618, %v616
    %v741 = vpack.c.b16 %v621, %v619
    %v742 = vpack.c.b16 %v622, %v620
    %v743 = vpack.c.b16 %v625, %v623
    %v744 = vpack.c.b16 %v626, %v624
    %v745 = vpack.c.b16 %v629, %v627
    %v746 = vpack.c.b16 %v630, %v628
    %v747 = vpack.c.b16 %v633, %v631
    %v748 = vpack.c.b16 %v634, %v632
    %v749 = vpack.c.b16 %v637, %v635
    %v750 = vpack.c.b16 %v638, %v636
    %v751 = vpack.c.b16 %v641, %v639
    %v752 = vpack.c.b16 %v642, %v640
    %v753 = vpack.c.b16 %v645, %v643
    %v754 = vpack.c.b16 %v646, %v644
    %v755 = vpack.c.b16 %v649, %v647
    %v756 = vpack.c.b16 %v650, %v648
    %v757 = vpack.c.b16 %v653, %v651
    %v758 = vpack.c.b16 %v654, %v652
    %v759 = vpack.c.b16 %v657, %v655
    %v760 = vpack.c.b16 %v658, %v656
    %v761 = vpack.c.b16 %v661, %v659
    %v762 = vpack.c.b16 %v662, %v660
    %v763 = vpack.c.b16 %v665, %v663
    %v764 = vpack.c.b16 %v666, %v664
    %v765 = vpack.c.b16 %v669, %v667
    %v766 = vpack.c.b16 %v670, %v668
    %v767 = vpack.c.b16 %v673, %v671
    %v768 = vpack.c.b16 %v674, %v672
    %v769 = vpack.c.b16 %v677, %v675
    %v770 = vpack.c.b16 %v678, %v676
    %v771 = vpack.c.b16 %v681, %v679
    %v772 = vpack.c.b16 %v682, %v680
    %v773 = vpack.c.b16 %v685, %v683
    %v774 = vpack.c.b16 %v686, %v684
    %v775 = vpack.c.b16 %v689, %v687
    %v776 = vpack.c.b16 %v690, %v688
    %v777 = vpack.c.b16 %v693, %v691
    %v778 = vpack.c.b16 %v694, %v692
    %v779 = vpack.c.b16 %v697, %v695
    %v780 = vpack.c.b16 %v698, %v696
    %v781 = vpack.c.b16 %v701, %v699
    %v782 = vpack.c.b16 %v702, %v700
    %v783 = vpack.c.b16 %v705, %v703
    %v784 = vpack.c.b16 %v706, %v704
    %v785 = vpack.c.b16 %v709, %v707
    %v786 = vpack.c.b16 %v710, %v708
    %v787 = vpack.c.b16 %v713, %v711
    %v788 = vpack.c.b16 %v714, %v712
    %v789 = vpack.c.b16 %v717, %v715
    %v790 = vpack.c.b16 %v718, %v716
    %v791 = vpack.c.b16 %v721, %v719
    %v792 = vpack.c.b16 %v722, %v720
    %v793 = vpack.c.b16 %v725, %v723
    %v794 = vpack.c.b16 %v726, %v724
    %v795 = vpack.c.b16 %v729, %v727
    %v796 = vpack.c.b16 %v730, %v728
    %v797 = vpack.c.b16 %v733, %v731
    %v798 = vpack.c.b16 %v734, %v732
    %863 = vmatprep.subr.bf16.mxu0 %v736
    %864 = vmatpush1.bf16.msra.mxu0 %v735
    %865 = vmatprep.subr.bf16.mxu0 %v738
    %866 = vmatpush1.bf16.msra.mxu0 %v737
    %867 = vmatprep.subr.bf16.mxu0 %v740
    %868 = vmatpush1.bf16.msra.mxu0 %v739
    %869 = vmatprep.subr.bf16.mxu0 %v742
    %870 = vmatpush1.bf16.msra.mxu0 %v741
    %871 = vmatprep.subr.bf16.mxu0 %v744
    %872 = vmatpush1.bf16.msra.mxu0 %v743
    %873 = vmatprep.subr.bf16.mxu0 %v746
    %874 = vmatpush1.bf16.msra.mxu0 %v745
    %875 = vmatprep.subr.bf16.mxu0 %v748
    %876 = vmatpush1.bf16.msra.mxu0 %v747
    %877 = vmatprep.subr.bf16.mxu0 %v750
    %878 = vmatpush1.bf16.msra.mxu0 %v749
    %879 = vmatprep.subr.bf16.mxu0 %v752
    %880 = vmatpush1.bf16.msra.mxu0 %v751
    %881 = vmatprep.subr.bf16.mxu0 %v754
    %882 = vmatpush1.bf16.msra.mxu0 %v753
    %883 = vmatprep.subr.bf16.mxu0 %v756
    %884 = vmatpush1.bf16.msra.mxu0 %v755
    %885 = vmatprep.subr.bf16.mxu0 %v758
    %886 = vmatpush1.bf16.msra.mxu0 %v757
    %887 = vmatprep.subr.bf16.mxu0 %v760
    %888 = vmatpush1.bf16.msra.mxu0 %v759
    %889 = vmatprep.subr.bf16.mxu0 %v762
    %890 = vmatpush1.bf16.msra.mxu0 %v761
    %891 = vmatprep.subr.bf16.mxu0 %v764
    %892 = vmatpush1.bf16.msra.mxu0 %v763
    %893 = vmatprep.subr.bf16.mxu0 %v766
    %894 = vmatpush1.bf16.msra.mxu0 %v765
    %895 = vmatprep.mubr.bf16.mxu0 %v476
    %896 = vmatmul.mubr.bf16.gmra.mrb[0].mxu0 %v475
    %v897 = vpop.f32.mrb[0].mxu0
    %v898 = vadd.f32 0.0, %v897
    %v899 = vpop.f32.mrb[0].mxu0
    %v900 = vadd.f32 0.0, %v899
    %v901 = vpop.f32.mrb[0].mxu0
    %v902 = vadd.f32 0.0, %v901
    %v903 = vpop.f32.mrb[0].mxu0
    %v904 = vadd.f32 0.0, %v903
    %905 = vdwg.mxu0
    %906 = vmatprep.subr.bf16.mxu0 %v768
    %907 = vmatpush1.bf16.msra.mxu0 %v767
    %908 = vmatprep.subr.bf16.mxu0 %v770
    %909 = vmatpush1.bf16.msra.mxu0 %v769
    %910 = vmatprep.subr.bf16.mxu0 %v772
    %911 = vmatpush1.bf16.msra.mxu0 %v771
    %912 = vmatprep.subr.bf16.mxu0 %v774
    %913 = vmatpush1.bf16.msra.mxu0 %v773
    %914 = vmatprep.subr.bf16.mxu0 %v776
    %915 = vmatpush1.bf16.msra.mxu0 %v775
    %916 = vmatprep.subr.bf16.mxu0 %v778
    %917 = vmatpush1.bf16.msra.mxu0 %v777
    %918 = vmatprep.subr.bf16.mxu0 %v780
    %919 = vmatpush1.bf16.msra.mxu0 %v779
    %920 = vmatprep.subr.bf16.mxu0 %v782
    %921 = vmatpush1.bf16.msra.mxu0 %v781
    %922 = vmatprep.subr.bf16.mxu0 %v784
    %923 = vmatpush1.bf16.msra.mxu0 %v783
    %924 = vmatprep.subr.bf16.mxu0 %v786
    %925 = vmatpush1.bf16.msra.mxu0 %v785
    %926 = vmatprep.subr.bf16.mxu0 %v788
    %927 = vmatpush1.bf16.msra.mxu0 %v787
    %928 = vmatprep.subr.bf16.mxu0 %v790
    %929 = vmatpush1.bf16.msra.mxu0 %v789
    %930 = vmatprep.subr.bf16.mxu0 %v792
    %931 = vmatpush1.bf16.msra.mxu0 %v791
    %932 = vmatprep.subr.bf16.mxu0 %v794
    %933 = vmatpush1.bf16.msra.mxu0 %v793
    %934 = vmatprep.subr.bf16.mxu0 %v796
    %935 = vmatpush1.bf16.msra.mxu0 %v795
    %936 = vmatprep.subr.bf16.mxu0 %v798
    %937 = vmatpush1.bf16.msra.mxu0 %v797
    %938 = vmatprep.mubr.bf16.mxu0 %v478
    %939 = vmatmul.mubr.bf16.gmra.mrb[0].mxu0 %v477
    %v940 = vpop.f32.mrb[0].mxu0
    %v941 = vadd.f32 %v898, %v940
    %v942 = vpop.f32.mrb[0].mxu0
    %v943 = vadd.f32 %v900, %v942
    %v944 = vpop.f32.mrb[0].mxu0
    %v945 = vadd.f32 %v902, %v944
    %v946 = vpop.f32.mrb[0].mxu0
    %v947 = vadd.f32 %v904, %v946
    %948 = vdwg.mxu0
    %v949 = vpack.c.bf16 %v945, %v941
    %v950 = vpack.c.bf16 %v947, %v943
    %v951 = vld [vmem:[%s6] sm:$0xf]
    %v952 = vld [vmem:[%s6 + $0x4] sm:$0xf]
    %v953 = vld [vmem:[%s6 + $0x8] sm:$0xf]
    %v954 = vld [vmem:[%s6 + $0xc] sm:$0xf]
    %v955 = vld [vmem:[%s6 + $0x10] sm:$0xf]
    %v956 = vld [vmem:[%s6 + $0x14] sm:$0xf]
    %v957 = vld [vmem:[%s6 + $0x18] sm:$0xf]
    %v958 = vld [vmem:[%s6 + $0x1c] sm:$0xf]
    %v959 = vld [vmem:[%s6 + $0x20] sm:$0xf]
    %v960 = vld [vmem:[%s6 + $0x24] sm:$0xf]
    %v961 = vld [vmem:[%s6 + $0x28] sm:$0xf]
    %v962 = vld [vmem:[%s6 + $0x2c] sm:$0xf]
    %v963 = vld [vmem:[%s6 + $0x30] sm:$0xf]
    %v964 = vld [vmem:[%s6 + $0x34] sm:$0xf]
    %v965 = vld [vmem:[%s6 + $0x38] sm:$0xf]
    %v966 = vld [vmem:[%s6 + $0x3c] sm:$0xf]
    %v967 = vld [vmem:[%s6 + $0x40] sm:$0xf]
    %v968 = vld [vmem:[%s6 + $0x44] sm:$0xf]
    %v969 = vld [vmem:[%s6 + $0x48] sm:$0xf]
    %v970 = vld [vmem:[%s6 + $0x4c] sm:$0xf]
    %v971 = vld [vmem:[%s6 + $0x50] sm:$0xf]
    %v972 = vld [vmem:[%s6 + $0x54] sm:$0xf]
    %v973 = vld [vmem:[%s6 + $0x58] sm:$0xf]
    %v974 = vld [vmem:[%s6 + $0x5c] sm:$0xf]
    %v975 = vld [vmem:[%s6 + $0x60] sm:$0xf]
    %v976 = vld [vmem:[%s6 + $0x64] sm:$0xf]
    %v977 = vld [vmem:[%s6 + $0x68] sm:$0xf]
    %v978 = vld [vmem:[%s6 + $0x6c] sm:$0xf]
    %v979 = vld [vmem:[%s6 + $0x70] sm:$0xf]
    %v980 = vld [vmem:[%s6 + $0x74] sm:$0xf]
    %v981 = vld [vmem:[%s6 + $0x78] sm:$0xf]
    %v982 = vld [vmem:[%s6 + $0x7c] sm:$0xf]
    %v1015 = vunpack.c.l.b16 %v951
    %v1016 = vunpack.c.l.b16 %v952
    %v1017 = vunpack.c.l.b16 %v953
    %v1018 = vunpack.c.l.b16 %v954
    %v1019 = vunpack.c.l.b16 %v955
    %v1020 = vunpack.c.l.b16 %v956
    %v1021 = vunpack.c.l.b16 %v957
    %v1022 = vunpack.c.l.b16 %v958
    %v1023 = vunpack.c.l.b16 %v959
    %v1024 = vunpack.c.l.b16 %v960
    %v1025 = vunpack.c.l.b16 %v961
    %v1026 = vunpack.c.l.b16 %v962
    %v1027 = vunpack.c.l.b16 %v963
    %v1028 = vunpack.c.l.b16 %v964
    %v1029 = vunpack.c.l.b16 %v965
    %v1030 = vunpack.c.l.b16 %v966
    %v1031 = vunpack.c.l.b16 %v967
    %v1032 = vunpack.c.l.b16 %v968
    %v1033 = vunpack.c.l.b16 %v969
    %v1034 = vunpack.c.l.b16 %v970
    %v1035 = vunpack.c.l.b16 %v971
    %v1036 = vunpack.c.l.b16 %v972
    %v1037 = vunpack.c.l.b16 %v973
    %v1038 = vunpack.c.l.b16 %v974
    %v1039 = vunpack.c.l.b16 %v975
    %v1040 = vunpack.c.l.b16 %v976
    %v1041 = vunpack.c.l.b16 %v977
    %v1042 = vunpack.c.l.b16 %v978
    %v1043 = vunpack.c.l.b16 %v979
    %v1044 = vunpack.c.l.b16 %v980
    %v1045 = vunpack.c.l.b16 %v981
    %v1046 = vunpack.c.l.b16 %v982
    %v1047 = vpack.c.b16 %v1016, %v1015
    %v1048 = vpack.c.b16 %v1018, %v1017
    %v1049 = vpack.c.b16 %v1020, %v1019
    %v1050 = vpack.c.b16 %v1022, %v1021
    %v1051 = vpack.c.b16 %v1024, %v1023
    %v1052 = vpack.c.b16 %v1026, %v1025
    %v1053 = vpack.c.b16 %v1028, %v1027
    %v1054 = vpack.c.b16 %v1030, %v1029
    %v1055 = vpack.c.b16 %v1032, %v1031
    %v1056 = vpack.c.b16 %v1034, %v1033
    %v1057 = vpack.c.b16 %v1036, %v1035
    %v1058 = vpack.c.b16 %v1038, %v1037
    %v1059 = vpack.c.b16 %v1040, %v1039
    %v1060 = vpack.c.b16 %v1042, %v1041
    %v1061 = vpack.c.b16 %v1044, %v1043
    %v1062 = vpack.c.b16 %v1046, %v1045
    %1079 = vmatprep.subr.bf16.mxu0 0
    %1080 = vmatpush1.bf16.msra.mxu0 %v1047
    %1081 = vmatprep.subr.bf16.mxu0 0
    %1082 = vmatpush1.bf16.msra.mxu0 %v1048
    %1083 = vmatprep.subr.bf16.mxu0 0
    %1084 = vmatpush1.bf16.msra.mxu0 %v1049
    %1085 = vmatprep.subr.bf16.mxu0 0
    %1086 = vmatpush1.bf16.msra.mxu0 %v1050
    %1087 = vmatprep.subr.bf16.mxu0 0
    %1088 = vmatpush1.bf16.msra.mxu0 %v1051
    %1089 = vmatprep.subr.bf16.mxu0 0
    %1090 = vmatpush1.bf16.msra.mxu0 %v1052
    %1091 = vmatprep.subr.bf16.mxu0 0
    %1092 = vmatpush1.bf16.msra.mxu0 %v1053
    %1093 = vmatprep.subr.bf16.mxu0 0
    %1094 = vmatpush1.bf16.msra.mxu0 %v1054
    %1095 = vmatprep.subr.bf16.mxu0 0
    %1096 = vmatpush1.bf16.msra.mxu0 %v1055
    %1097 = vmatprep.subr.bf16.mxu0 0
    %1098 = vmatpush1.bf16.msra.mxu0 %v1056
    %1099 = vmatprep.subr.bf16.mxu0 0
    %1100 = vmatpush1.bf16.msra.mxu0 %v1057
    %1101 = vmatprep.subr.bf16.mxu0 0
    %1102 = vmatpush1.bf16.msra.mxu0 %v1058
    %1103 = vmatprep.subr.bf16.mxu0 0
    %1104 = vmatpush1.bf16.msra.mxu0 %v1059
    %1105 = vmatprep.subr.bf16.mxu0 0
    %1106 = vmatpush1.bf16.msra.mxu0 %v1060
    %1107 = vmatprep.subr.bf16.mxu0 0
    %1108 = vmatpush1.bf16.msra.mxu0 %v1061
    %1109 = vmatprep.subr.bf16.mxu0 0
    %1110 = vmatpush1.bf16.msra.mxu0 %v1062
    %1111 = vmatprep.mubr.bf16.mxu0 %v950
    %1112 = vmatmul.mubr.bf16.gmra.mrb[0].mxu0 %v949
    %v1113 = vpop.f32.mrb[0].mxu0
    %v1114 = vadd.f32 0.0, %v1113
    %v1115 = vpop.f32.mrb[0].mxu0
    %v1116 = vpop.f32.mrb[0].mxu0
    %v1117 = vadd.f32 0.0, %v1116
    %v1118 = vpop.f32.mrb[0].mxu0
    %1119 = vdwg.mxu0
    %1120 = vxpose.xlu0.b32.start [1/16] %v1114, 128
    %1121 = vxpose.xlu0.b32.cont [2/16] %v1117, 128
    %1122 = vxpose.xlu0.b32.cont [3/16] 0.0, 128
    %1123 = vxpose.xlu0.b32.cont [4/16] 0.0, 128
    %1124 = vxpose.xlu0.b32.cont [5/16] 0.0, 128
    %1125 = vxpose.xlu0.b32.cont [6/16] 0.0, 128
    %1126 = vxpose.xlu0.b32.cont [7/16] 0.0, 128
    %1127 = vxpose.xlu0.b32.cont [8/16] 0.0, 128
    %1128 = vxpose.xlu0.b32.cont [9/16] 0.0, 128
    %1129 = vxpose.xlu0.b32.cont [10/16] 0.0, 128
    %1130 = vxpose.xlu0.b32.cont [11/16] 0.0, 128
    %1131 = vxpose.xlu0.b32.cont [12/16] 0.0, 128
    %1132 = vxpose.xlu0.b32.cont [13/16] 0.0, 128
    %1133 = vxpose.xlu0.b32.cont [14/16] 0.0, 128
    %1134 = vxpose.xlu0.b32.cont [15/16] 0.0, 128
    %1135 = vxpose.xlu0.b32.end [16/16] 0.0, 128
    %v1136 = vpop.trf.xlu0
    %v1137 = vpop.trf.xlu0
    %v1138 = vpop.trf.xlu0
    %v1139 = vpop.trf.xlu0
    %v1140 = vpop.trf.xlu0
    %v1141 = vpop.trf.xlu0
    %v1142 = vpop.trf.xlu0
    %v1143 = vpop.trf.xlu0
    %v1144 = vpop.trf.xlu0
    %v1145 = vpop.trf.xlu0
    %v1146 = vpop.trf.xlu0
    %v1147 = vpop.trf.xlu0
    %v1148 = vpop.trf.xlu0
    %v1149 = vpop.trf.xlu0
    %v1150 = vpop.trf.xlu0
    %v1151 = vpop.trf.xlu0
    %1153 = vset.pattern.permute.xlu0 1
    %1154 = vperm.xlu0 %1153, %v1114
    %v1155 = vpop.permute.xlu0 %1154
    %1158 = vset.pattern.permute.xlu0 1
    %1159 = vperm.xlu0 %1158, %v1117
    %v1160 = vpop.permute.xlu0 %1159
    %v1162 = vlaneseq
    %v1163 = vshrl.u32 %v1162, 7
    %v1164 = vsub.s32 0, %v1163
    %v1165 = vrot.slane %v1136, %v1164
    %v1166 = vadd.f32 %v1155, %v1165
    %v1167 = vadd.f32 %v1160, %v1165
    %v1168 = vmul.f32 %v1166, 0.2
    %v1169 = vmul.f32 %v1167, 0.2
    %v1170 = vmax.f32 %v1166, %v1168
    %v1171 = vmax.f32 %v1167, %v1169
    %v1172 = vadd.f32 %v1170, %v60
    %v1173 = vadd.f32 %v1171, %v61
    %v1174 = vsel %vm318, %v1172, -inf
    %1175 = vmax.xlane.f32.xlu0 %v1174
    %v1176 = vpop.xlane.xlu0 %1175
    %v1177 = vsel %vm318, %v1173, -inf
    %1178 = vmax.xlane.f32.xlu0 %v1177
    %v1179 = vpop.xlane.xlu0 %1178
    %v1180 = vsub.f32 %v1172, %v1176
    %v1181 = vsub.f32 %v1173, %v1179
    %v1182 = vmul.f32 %v1180, 1.442695
    %v1183 = vpow.pop %v1182
    %v1184 = vmul.f32 %v1181, 1.442695
    %v1185 = vpow.pop %v1184
    %v1186 = vpack.c.bf16 %v1185, %v1183
    %v1188 = vsel %vm318, %v1186, 0
    %1190 = vmatprep.subr.bf16.mxu0 %v950
    %1191 = vmatpush1.bf16.msra.mxu0 %v949
    %1192 = vmatprep.subr.bf16.mxu0 0
    %1193 = vmatpush1.bf16.msra.mxu0 0
    %1194 = vmatprep.subr.bf16.mxu0 0
    %1195 = vmatpush1.bf16.msra.mxu0 0
    %1196 = vmatprep.subr.bf16.mxu0 0
    %1197 = vmatpush1.bf16.msra.mxu0 0
    %1198 = vmatprep.subr.bf16.mxu0 0
    %1199 = vmatpush1.bf16.msra.mxu0 0
    %1200 = vmatprep.subr.bf16.mxu0 0
    %1201 = vmatpush1.bf16.msra.mxu0 0
    %1202 = vmatprep.subr.bf16.mxu0 0
    %1203 = vmatpush1.bf16.msra.mxu0 0
    %1204 = vmatprep.subr.bf16.mxu0 0
    %1205 = vmatpush1.bf16.msra.mxu0 0
    %1206 = vmatprep.subr.bf16.mxu0 0
    %1207 = vmatpush1.bf16.msra.mxu0 0
    %1208 = vmatprep.subr.bf16.mxu0 0
    %1209 = vmatpush1.bf16.msra.mxu0 0
    %1210 = vmatprep.subr.bf16.mxu0 0
    %1211 = vmatpush1.bf16.msra.mxu0 0
    %1212 = vmatprep.subr.bf16.mxu0 0
    %1213 = vmatpush1.bf16.msra.mxu0 0
    %1214 = vmatprep.subr.bf16.mxu0 0
    %1215 = vmatpush1.bf16.msra.mxu0 0
    %1216 = vmatprep.subr.bf16.mxu0 0
    %1217 = vmatpush1.bf16.msra.mxu0 0
    %1218 = vmatprep.subr.bf16.mxu0 0
    %1219 = vmatpush1.bf16.msra.mxu0 0
    %1220 = vmatprep.subr.bf16.mxu0 0
    %1221 = vmatpush1.bf16.msra.mxu0 0
    %1222 = vmatprep.mubr.bf16.mxu0 0
    %1223 = vmatmul.mubr.bf16.gmra.mrb[0].mxu0 %v1188
    %v1224 = vpop.f32.mrb[0].mxu0
    %v1225 = vadd.f32 0.0, %v1224
    %v1226 = vpop.f32.mrb[0].mxu0
    %v1227 = vadd.f32 0.0, %v1226
    %v1228 = vpop.f32.mrb[0].mxu0
    %v1229 = vadd.f32 0.0, %v1228
    %v1230 = vpop.f32.mrb[0].mxu0
    %v1231 = vadd.f32 0.0, %v1230
    %1232 = vdwg.mxu0
    %v1233 = vsel %vm318, %v1183, 0.0
    %1234 = vadd.xlane.f32.xlu0 %v1233
    %v1235 = vpop.xlane.xlu0 %1234
    %v1236 = vsel %vm318, %v1185, 0.0
    %1237 = vadd.xlane.f32.xlu0 %v1236
    %v1238 = vpop.xlane.xlu0 %1237
    %v1239 = vrcp.pop %v1235
    %v1240 = vrcp.pop %v1238
    %v1241 = vmul.f32 %v1225, %v1239
    %v1242 = vmul.f32 %v1227, %v1239
    %v1243 = vmul.f32 %v1229, %v1240
    %v1244 = vmul.f32 %v1231, %v1240
    %v1245 = vld [vmem:[%s7] sm:$0x3]
    %v1247 = vlaneseq
    %v1248 = vshrl.u32 %v1247, 7
    %v1249 = vsub.s32 0, %v1248
    %v1250 = vrot.slane %v1245, %v1249
    %v1251 = vlaneseq
    %v1252 = vshrl.u32 %v1251, 7
    %v1253 = vsub.s32 1, %v1252
    %v1254 = vrot.slane %v1245, %v1253
    %v1257 = vadd.f32 %v1241, %v1250
    %v1258 = vadd.f32 %v1242, %v1254
    %v1259 = vadd.f32 %v1243, %v1250
    %v1260 = vadd.f32 %v1244, %v1254
    %v1261 = vmax.f32 %v1257, 0.0
    %v1262 = vmax.f32 %v1258, 0.0
    %v1263 = vmax.f32 %v1259, 0.0
    %v1264 = vmax.f32 %v1260, 0.0
    %v1265 = vpack.c.bf16 %v1263, %v1261
    %v1266 = vpack.c.bf16 %v1264, %v1262
    %v1267 = vld [vmem:[%s8] sm:$0xf]
    %v1268 = vld [vmem:[%s8 + $0x4] sm:$0xf]
    %v1269 = vld [vmem:[%s8 + $0x8] sm:$0xf]
    %v1270 = vld [vmem:[%s8 + $0xc] sm:$0xf]
    %v1271 = vld [vmem:[%s8 + $0x10] sm:$0xf]
    %v1272 = vld [vmem:[%s8 + $0x14] sm:$0xf]
    %v1273 = vld [vmem:[%s8 + $0x18] sm:$0xf]
    %v1274 = vld [vmem:[%s8 + $0x1c] sm:$0xf]
    %v1275 = vld [vmem:[%s8 + $0x20] sm:$0xf]
    %v1276 = vld [vmem:[%s8 + $0x24] sm:$0xf]
    %v1277 = vld [vmem:[%s8 + $0x28] sm:$0xf]
    %v1278 = vld [vmem:[%s8 + $0x2c] sm:$0xf]
    %v1279 = vld [vmem:[%s8 + $0x30] sm:$0xf]
    %v1280 = vld [vmem:[%s8 + $0x34] sm:$0xf]
    %v1281 = vld [vmem:[%s8 + $0x38] sm:$0xf]
    %v1282 = vld [vmem:[%s8 + $0x3c] sm:$0xf]
    %v1283 = vld [vmem:[%s8 + $0x40] sm:$0xf]
    %v1284 = vld [vmem:[%s8 + $0x44] sm:$0xf]
    %v1285 = vld [vmem:[%s8 + $0x48] sm:$0xf]
    %v1286 = vld [vmem:[%s8 + $0x4c] sm:$0xf]
    %v1287 = vld [vmem:[%s8 + $0x50] sm:$0xf]
    %v1288 = vld [vmem:[%s8 + $0x54] sm:$0xf]
    %v1289 = vld [vmem:[%s8 + $0x58] sm:$0xf]
    %v1290 = vld [vmem:[%s8 + $0x5c] sm:$0xf]
    %v1291 = vld [vmem:[%s8 + $0x60] sm:$0xf]
    %v1292 = vld [vmem:[%s8 + $0x64] sm:$0xf]
    %v1293 = vld [vmem:[%s8 + $0x68] sm:$0xf]
    %v1294 = vld [vmem:[%s8 + $0x6c] sm:$0xf]
    %v1295 = vld [vmem:[%s8 + $0x70] sm:$0xf]
    %v1296 = vld [vmem:[%s8 + $0x74] sm:$0xf]
    %v1297 = vld [vmem:[%s8 + $0x78] sm:$0xf]
    %v1298 = vld [vmem:[%s8 + $0x7c] sm:$0xf]
    %v1331 = vunpack.c.l.b16 %v1267
    %v1332 = vunpack.c.l.b16 %v1268
    %v1333 = vunpack.c.l.b16 %v1269
    %v1334 = vunpack.c.l.b16 %v1270
    %v1335 = vunpack.c.l.b16 %v1271
    %v1336 = vunpack.c.l.b16 %v1272
    %v1337 = vunpack.c.l.b16 %v1273
    %v1338 = vunpack.c.l.b16 %v1274
    %v1339 = vunpack.c.l.b16 %v1275
    %v1340 = vunpack.c.l.b16 %v1276
    %v1341 = vunpack.c.l.b16 %v1277
    %v1342 = vunpack.c.l.b16 %v1278
    %v1343 = vunpack.c.l.b16 %v1279
    %v1344 = vunpack.c.l.b16 %v1280
    %v1345 = vunpack.c.l.b16 %v1281
    %v1346 = vunpack.c.l.b16 %v1282
    %v1347 = vunpack.c.l.b16 %v1283
    %v1348 = vunpack.c.l.b16 %v1284
    %v1349 = vunpack.c.l.b16 %v1285
    %v1350 = vunpack.c.l.b16 %v1286
    %v1351 = vunpack.c.l.b16 %v1287
    %v1352 = vunpack.c.l.b16 %v1288
    %v1353 = vunpack.c.l.b16 %v1289
    %v1354 = vunpack.c.l.b16 %v1290
    %v1355 = vunpack.c.l.b16 %v1291
    %v1356 = vunpack.c.l.b16 %v1292
    %v1357 = vunpack.c.l.b16 %v1293
    %v1358 = vunpack.c.l.b16 %v1294
    %v1359 = vunpack.c.l.b16 %v1295
    %v1360 = vunpack.c.l.b16 %v1296
    %v1361 = vunpack.c.l.b16 %v1297
    %v1362 = vunpack.c.l.b16 %v1298
    %v1363 = vpack.c.b16 %v1332, %v1331
    %v1364 = vpack.c.b16 %v1334, %v1333
    %v1365 = vpack.c.b16 %v1336, %v1335
    %v1366 = vpack.c.b16 %v1338, %v1337
    %v1367 = vpack.c.b16 %v1340, %v1339
    %v1368 = vpack.c.b16 %v1342, %v1341
    %v1369 = vpack.c.b16 %v1344, %v1343
    %v1370 = vpack.c.b16 %v1346, %v1345
    %v1371 = vpack.c.b16 %v1348, %v1347
    %v1372 = vpack.c.b16 %v1350, %v1349
    %v1373 = vpack.c.b16 %v1352, %v1351
    %v1374 = vpack.c.b16 %v1354, %v1353
    %v1375 = vpack.c.b16 %v1356, %v1355
    %v1376 = vpack.c.b16 %v1358, %v1357
    %v1377 = vpack.c.b16 %v1360, %v1359
    %v1378 = vpack.c.b16 %v1362, %v1361
    %1395 = vmatprep.subr.bf16.mxu0 0
    %1396 = vmatpush1.bf16.msra.mxu0 %v1363
    %1397 = vmatprep.subr.bf16.mxu0 0
    %1398 = vmatpush1.bf16.msra.mxu0 %v1364
    %1399 = vmatprep.subr.bf16.mxu0 0
    %1400 = vmatpush1.bf16.msra.mxu0 %v1365
    %1401 = vmatprep.subr.bf16.mxu0 0
    %1402 = vmatpush1.bf16.msra.mxu0 %v1366
    %1403 = vmatprep.subr.bf16.mxu0 0
    %1404 = vmatpush1.bf16.msra.mxu0 %v1367
    %1405 = vmatprep.subr.bf16.mxu0 0
    %1406 = vmatpush1.bf16.msra.mxu0 %v1368
    %1407 = vmatprep.subr.bf16.mxu0 0
    %1408 = vmatpush1.bf16.msra.mxu0 %v1369
    %1409 = vmatprep.subr.bf16.mxu0 0
    %1410 = vmatpush1.bf16.msra.mxu0 %v1370
    %1411 = vmatprep.subr.bf16.mxu0 0
    %1412 = vmatpush1.bf16.msra.mxu0 %v1371
    %1413 = vmatprep.subr.bf16.mxu0 0
    %1414 = vmatpush1.bf16.msra.mxu0 %v1372
    %1415 = vmatprep.subr.bf16.mxu0 0
    %1416 = vmatpush1.bf16.msra.mxu0 %v1373
    %1417 = vmatprep.subr.bf16.mxu0 0
    %1418 = vmatpush1.bf16.msra.mxu0 %v1374
    %1419 = vmatprep.subr.bf16.mxu0 0
    %1420 = vmatpush1.bf16.msra.mxu0 %v1375
    %1421 = vmatprep.subr.bf16.mxu0 0
    %1422 = vmatpush1.bf16.msra.mxu0 %v1376
    %1423 = vmatprep.subr.bf16.mxu0 0
    %1424 = vmatpush1.bf16.msra.mxu0 %v1377
    %1425 = vmatprep.subr.bf16.mxu0 0
    %1426 = vmatpush1.bf16.msra.mxu0 %v1378
    %1427 = vmatprep.mubr.bf16.mxu0 %v1266
    %1428 = vmatmul.mubr.bf16.gmra.mrb[0].mxu0 %v1265
    %v1429 = vpop.f32.mrb[0].mxu0
    %v1430 = vadd.f32 0.0, %v1429
    %v1431 = vpop.f32.mrb[0].mxu0
    %v1432 = vpop.f32.mrb[0].mxu0
    %v1433 = vadd.f32 0.0, %v1432
    %v1434 = vpop.f32.mrb[0].mxu0
    %1435 = vdwg.mxu0
    %v1436 = vpack.c.bf16 %v1433, %v1430
    %v1437 = vld [vmem:[%s9] sm:$0xf]
    %v1438 = vld [vmem:[%s9 + $0x4] sm:$0xf]
    %v1439 = vld [vmem:[%s9 + $0x8] sm:$0xf]
    %v1440 = vld [vmem:[%s9 + $0xc] sm:$0xf]
    %v1441 = vld [vmem:[%s9 + $0x10] sm:$0xf]
    %v1442 = vld [vmem:[%s9 + $0x14] sm:$0xf]
    %v1443 = vld [vmem:[%s9 + $0x18] sm:$0xf]
    %v1444 = vld [vmem:[%s9 + $0x1c] sm:$0xf]
    %v1445 = vld [vmem:[%s9 + $0x20] sm:$0xf]
    %v1446 = vld [vmem:[%s9 + $0x24] sm:$0xf]
    %v1447 = vld [vmem:[%s9 + $0x28] sm:$0xf]
    %v1448 = vld [vmem:[%s9 + $0x2c] sm:$0xf]
    %v1449 = vld [vmem:[%s9 + $0x30] sm:$0xf]
    %v1450 = vld [vmem:[%s9 + $0x34] sm:$0xf]
    %v1451 = vld [vmem:[%s9 + $0x38] sm:$0xf]
    %v1452 = vld [vmem:[%s9 + $0x3c] sm:$0xf]
    %v1469 = vunpack.c.l.b16 %v1437
    %v1470 = vunpack.c.l.b16 %v1438
    %v1471 = vunpack.c.l.b16 %v1439
    %v1472 = vunpack.c.l.b16 %v1440
    %v1473 = vunpack.c.l.b16 %v1441
    %v1474 = vunpack.c.l.b16 %v1442
    %v1475 = vunpack.c.l.b16 %v1443
    %v1476 = vunpack.c.l.b16 %v1444
    %v1477 = vunpack.c.l.b16 %v1445
    %v1478 = vunpack.c.l.b16 %v1446
    %v1479 = vunpack.c.l.b16 %v1447
    %v1480 = vunpack.c.l.b16 %v1448
    %v1481 = vunpack.c.l.b16 %v1449
    %v1482 = vunpack.c.l.b16 %v1450
    %v1483 = vunpack.c.l.b16 %v1451
    %v1484 = vunpack.c.l.b16 %v1452
    %v1485 = vpack.c.b16 %v1470, %v1469
    %v1486 = vpack.c.b16 %v1472, %v1471
    %v1487 = vpack.c.b16 %v1474, %v1473
    %v1488 = vpack.c.b16 %v1476, %v1475
    %v1489 = vpack.c.b16 %v1478, %v1477
    %v1490 = vpack.c.b16 %v1480, %v1479
    %v1491 = vpack.c.b16 %v1482, %v1481
    %v1492 = vpack.c.b16 %v1484, %v1483
    %1501 = vmatprep.subr.bf16.mxu0 0
    %1502 = vmatpush1.bf16.msra.mxu0 %v1485
    %1503 = vmatprep.subr.bf16.mxu0 0
    %1504 = vmatpush1.bf16.msra.mxu0 %v1486
    %1505 = vmatprep.subr.bf16.mxu0 0
    %1506 = vmatpush1.bf16.msra.mxu0 %v1487
    %1507 = vmatprep.subr.bf16.mxu0 0
    %1508 = vmatpush1.bf16.msra.mxu0 %v1488
    %1509 = vmatprep.subr.bf16.mxu0 0
    %1510 = vmatpush1.bf16.msra.mxu0 %v1489
    %1511 = vmatprep.subr.bf16.mxu0 0
    %1512 = vmatpush1.bf16.msra.mxu0 %v1490
    %1513 = vmatprep.subr.bf16.mxu0 0
    %1514 = vmatpush1.bf16.msra.mxu0 %v1491
    %1515 = vmatprep.subr.bf16.mxu0 0
    %1516 = vmatpush1.bf16.msra.mxu0 %v1492
    %1517 = vmatprep.subr.bf16.mxu0 0
    %1518 = vmatpush1.bf16.msra.mxu0 0
    %1519 = vmatprep.subr.bf16.mxu0 0
    %1520 = vmatpush1.bf16.msra.mxu0 0
    %1521 = vmatprep.subr.bf16.mxu0 0
    %1522 = vmatpush1.bf16.msra.mxu0 0
    %1523 = vmatprep.subr.bf16.mxu0 0
    %1524 = vmatpush1.bf16.msra.mxu0 0
    %1525 = vmatprep.subr.bf16.mxu0 0
    %1526 = vmatpush1.bf16.msra.mxu0 0
    %1527 = vmatprep.subr.bf16.mxu0 0
    %1528 = vmatpush1.bf16.msra.mxu0 0
    %1529 = vmatprep.subr.bf16.mxu0 0
    %1530 = vmatpush1.bf16.msra.mxu0 0
    %1531 = vmatprep.subr.bf16.mxu0 0
    %1532 = vmatpush1.bf16.msra.mxu0 0
    %1533 = vmatprep.mubr.bf16.mxu0 0
    %1534 = vmatmul.mubr.bf16.gmra.mrb[0].mxu0 %v1436
    %v1535 = vpop.f32.mrb[0].mxu0
    %v1536 = vadd.f32 0.0, %v1535
    %v1537 = vpop.f32.mrb[0].mxu0
    %v1538 = vpop.f32.mrb[0].mxu0
    %v1539 = vadd.f32 0.0, %v1538
    %v1540 = vpop.f32.mrb[0].mxu0
    %1541 = vdwg.mxu0
    %1542 = vxpose.xlu0.b32.start [1/16] %v1536, 128
    %1543 = vxpose.xlu0.b32.cont [2/16] %v1539, 128
    %1544 = vxpose.xlu0.b32.cont [3/16] 0.0, 128
    %1545 = vxpose.xlu0.b32.cont [4/16] 0.0, 128
    %1546 = vxpose.xlu0.b32.cont [5/16] 0.0, 128
    %1547 = vxpose.xlu0.b32.cont [6/16] 0.0, 128
    %1548 = vxpose.xlu0.b32.cont [7/16] 0.0, 128
    %1549 = vxpose.xlu0.b32.cont [8/16] 0.0, 128
    %1550 = vxpose.xlu0.b32.cont [9/16] 0.0, 128
    %1551 = vxpose.xlu0.b32.cont [10/16] 0.0, 128
    %1552 = vxpose.xlu0.b32.cont [11/16] 0.0, 128
    %1553 = vxpose.xlu0.b32.cont [12/16] 0.0, 128
    %1554 = vxpose.xlu0.b32.cont [13/16] 0.0, 128
    %1555 = vxpose.xlu0.b32.cont [14/16] 0.0, 128
    %1556 = vxpose.xlu0.b32.cont [15/16] 0.0, 128
    %1557 = vxpose.xlu0.b32.end [16/16] 0.0, 128
    %v1558 = vpop.trf.xlu0
    %v1559 = vpop.trf.xlu0
    %v1560 = vpop.trf.xlu0
    %v1561 = vpop.trf.xlu0
    %v1562 = vpop.trf.xlu0
    %v1563 = vpop.trf.xlu0
    %v1564 = vpop.trf.xlu0
    %v1565 = vpop.trf.xlu0
    %v1566 = vpop.trf.xlu0
    %v1567 = vpop.trf.xlu0
    %v1568 = vpop.trf.xlu0
    %v1569 = vpop.trf.xlu0
    %v1570 = vpop.trf.xlu0
    %v1571 = vpop.trf.xlu0
    %v1572 = vpop.trf.xlu0
    %v1573 = vpop.trf.xlu0
    %1575 = vset.pattern.permute.xlu0 1
    %1576 = vperm.xlu0 %1575, %v1536
    %v1577 = vpop.permute.xlu0 %1576
    %1580 = vset.pattern.permute.xlu0 1
    %1581 = vperm.xlu0 %1580, %v1539
    %v1582 = vpop.permute.xlu0 %1581
    %v1584 = vlaneseq
    %v1585 = vshrl.u32 %v1584, 7
    %v1586 = vsub.s32 0, %v1585
    %v1587 = vrot.slane %v1558, %v1586
    %v1588 = vadd.f32 %v1577, %v1587
    %v1589 = vadd.f32 %v1582, %v1587
    %v1590 = vmul.f32 %v1588, 0.2
    %v1591 = vmul.f32 %v1589, 0.2
    %v1592 = vmax.f32 %v1588, %v1590
    %v1593 = vmax.f32 %v1589, %v1591
    %v1594 = vadd.f32 %v1592, %v60
    %v1595 = vadd.f32 %v1593, %v61
    %v1596 = vsel %vm318, %v1594, -inf
    %1597 = vmax.xlane.f32.xlu0 %v1596
    %v1598 = vpop.xlane.xlu0 %1597
    %v1599 = vsel %vm318, %v1595, -inf
    %1600 = vmax.xlane.f32.xlu0 %v1599
    %v1601 = vpop.xlane.xlu0 %1600
    %v1602 = vsub.f32 %v1594, %v1598
    %v1603 = vsub.f32 %v1595, %v1601
    %v1604 = vmul.f32 %v1602, 1.442695
    %v1605 = vpow.pop %v1604
    %v1606 = vmul.f32 %v1603, 1.442695
    %v1607 = vpow.pop %v1606
    %v1608 = vpack.c.bf16 %v1607, %v1605
    %v1610 = vsel %vm318, %v1608, 0
    %1612 = vmatprep.subr.bf16.mxu0 0
    %1613 = vmatpush1.bf16.msra.mxu0 %v1436
    %1614 = vmatprep.subr.bf16.mxu0 0
    %1615 = vmatpush1.bf16.msra.mxu0 0
    %1616 = vmatprep.subr.bf16.mxu0 0
    %1617 = vmatpush1.bf16.msra.mxu0 0
    %1618 = vmatprep.subr.bf16.mxu0 0
    %1619 = vmatpush1.bf16.msra.mxu0 0
    %1620 = vmatprep.subr.bf16.mxu0 0
    %1621 = vmatpush1.bf16.msra.mxu0 0
    %1622 = vmatprep.subr.bf16.mxu0 0
    %1623 = vmatpush1.bf16.msra.mxu0 0
    %1624 = vmatprep.subr.bf16.mxu0 0
    %1625 = vmatpush1.bf16.msra.mxu0 0
    %1626 = vmatprep.subr.bf16.mxu0 0
    %1627 = vmatpush1.bf16.msra.mxu0 0
    %1628 = vmatprep.subr.bf16.mxu0 0
    %1629 = vmatpush1.bf16.msra.mxu0 0
    %1630 = vmatprep.subr.bf16.mxu0 0
    %1631 = vmatpush1.bf16.msra.mxu0 0
    %1632 = vmatprep.subr.bf16.mxu0 0
    %1633 = vmatpush1.bf16.msra.mxu0 0
    %1634 = vmatprep.subr.bf16.mxu0 0
    %1635 = vmatpush1.bf16.msra.mxu0 0
    %1636 = vmatprep.subr.bf16.mxu0 0
    %1637 = vmatpush1.bf16.msra.mxu0 0
    %1638 = vmatprep.subr.bf16.mxu0 0
    %1639 = vmatpush1.bf16.msra.mxu0 0
    %1640 = vmatprep.subr.bf16.mxu0 0
    %1641 = vmatpush1.bf16.msra.mxu0 0
    %1642 = vmatprep.subr.bf16.mxu0 0
    %1643 = vmatpush1.bf16.msra.mxu0 0
    %1644 = vmatprep.mubr.bf16.mxu0 0
    %1645 = vmatmul.mubr.bf16.gmra.mrb[0].mxu0 %v1610
    %v1646 = vpop.f32.mrb[0].mxu0
    %v1647 = vadd.f32 0.0, %v1646
    %v1648 = vpop.f32.mrb[0].mxu0
    %v1649 = vpop.f32.mrb[0].mxu0
    %v1650 = vadd.f32 0.0, %v1649
    %v1651 = vpop.f32.mrb[0].mxu0
    %1652 = vdwg.mxu0
    %v1653 = vsel %vm318, %v1605, 0.0
    %1654 = vadd.xlane.f32.xlu0 %v1653
    %v1655 = vpop.xlane.xlu0 %1654
    %v1656 = vsel %vm318, %v1607, 0.0
    %1657 = vadd.xlane.f32.xlu0 %v1656
    %v1658 = vpop.xlane.xlu0 %1657
    %v1659 = vrcp.pop %v1655
    %v1660 = vrcp.pop %v1658
    %v1661 = vmul.f32 %v1647, %v1659
    %v1662 = vmul.f32 %v1650, %v1660
    %v1663 = vld [vmem:[%s10] sm:$0x1]
    %v1665 = vlaneseq
    %v1666 = vshrl.u32 %v1665, 7
    %v1667 = vsub.s32 0, %v1666
    %v1668 = vrot.slane %v1663, %v1667
    %v1670 = vadd.f32 %v1661, %v1668
    %v1671 = vadd.f32 %v1662, %v1668
    %v1672 = vlaneseq
    %v1673 = vand.u32 %v1672, 127
    %vm1674 = vcmp.lt.s32.totalorder %v1673, 8
    %v1675 = vsel %vm1674, 1, 0
    %vm1676 = vcmp.eq.s32.totalorder %v1675, 1
    %v1677 = vsel %vm1676, %v1670, -inf
    %v1678 = vsel %vm1676, %v1671, -inf
    %1679 = vmax.xlane.f32.xlu0 %v1677
    %v1680 = vpop.xlane.xlu0 %1679
    %1681 = vmax.xlane.f32.xlu0 %v1678
    %v1682 = vpop.xlane.xlu0 %1681
    %v1683 = vsub.f32 %v1677, %v1680
    %v1684 = vsub.f32 %v1678, %v1682
    %v1685 = vmul.f32 %v1683, 1.442695
    %v1686 = vpow.pop %v1685
    %v1687 = vmul.f32 %v1684, 1.442695
    %v1688 = vpow.pop %v1687
    %1689 = vadd.xlane.f32.xlu0 %v1686
    %v1690 = vpop.xlane.xlu0 %1689
    %1691 = vadd.xlane.f32.xlu0 %v1688
    %v1692 = vpop.xlane.xlu0 %1691
    %v1693 = vrcp.pop %v1690
    %v1694 = vmul.f32 %v1686, %v1693
    %v1695 = vrcp.pop %v1692
    %v1696 = vmul.f32 %v1688, %v1695
    %1697 = vst [vmem:[#allocation5] sm:$0xff] %v1694
    %1698 = vst [vmem:[#allocation5 + $0x8] sm:$0xff] %v1696
    // Predicated region
    $region50: #{tpu_custom_call.1} parent=1 // pred_check
      _
    $region51: #{tpu_custom_call.1} parent=1 // pred_check_branch
      %1700 = sbr.rel (0) target = $region53
    $region52: #{tpu_custom_call.1} parent=1 // pred_region
      %s1702 = ssub.s32 256, 256
      %1703 = vsyncadd [#allocation4], %s1702
      %s1704 = sshll.u32 [#allocation5], 4
      %s1705 = int_to_ptr.vmem [resolvable:$true] %s1704
      %1710 = dma.vmem_to_hbm [thread:$0]  %s1705, 256, %s11, [#allocation4], 128, 128, 8
    $region53: #{tpu_custom_call.1} parent=1 // pred_fallthru
      _
    // Predicated region
    $region54: #{tpu_custom_call.1} parent=1 // pred_check
      _
    $region55: #{tpu_custom_call.1} parent=1 // pred_check_branch
      %1712 = sbr.rel (0) target = $region57
    $region56: #{tpu_custom_call.1} parent=1 // pred_region
      %1713 = dma.done [#allocation4], 256
    $region57: #{tpu_custom_call.1} parent=1 // pred_fallthru
      _
    %1714 = vsyncpa [#allocation3], 1
    %1715 = vsyncpa [#allocation4], 1

</llo_original>
